<compile_context>
chip_gen: v7x
topology: tpu7x:2x2x1
jax: 0.10.0
libtpu: 0.0.40
codegen_flags: <defaults>
</compile_context>

<pallas_src>
import functools

import jax
import jax.numpy as jnp
from jax.experimental import pallas as pl
from jax.experimental.pallas import tpu as pltpu

EPS = 1e-5


def rb_kernel(x_ref, wa_ref, wb_ref, g1_ref, be1_ref, g2_ref, be2_ref,
              o_ref, *, H, W, C):
    # x_ref   : (M=N*H, W*C)   lane-dense input slab (f32)
    # wa/wb   : (3*W*C, W*C)   fused block-banded conv weights (bf16)
    # g/be    : (1, W*C)       BN gamma / beta, pre-tiled over the W groups
    # o_ref   : (M, W*C)       lane-dense output (f32)
    M, WC = x_ref.shape
    inv_cnt = 1.0 / float(M * W)

    # Per-row masks zeroing the taps that would read across an image (H)
    # boundary after the cyclic sublane roll of the flattened slab.
    row = jax.lax.broadcasted_iota(jnp.int32, (M, 1), 0)
    mtop = (row % H != 0).astype(jnp.float32)        # tap dy=0 reads row y-1
    mbot = (row % H != H - 1).astype(jnp.float32)    # tap dy=2 reads row y+1

    def conv(h, w_ref):
        # One fused K=3*WC MXU matmul: stack the three H-shifted slabs along
        # lanes (sublane pltpu.roll + boundary mask -> no padded scratch, no
        # strided-slice VMEM copies), bf16 operands, f32 accumulate.
        up = pltpu.roll(h, shift=1, axis=0) * mtop         # row y-1 slab
        dn = pltpu.roll(h, shift=M - 1, axis=0) * mbot     # row y+1 slab
        operand = jnp.concatenate([up, h, dn], axis=1).astype(jnp.bfloat16)
        return jnp.dot(operand, w_ref[...],
                       preferred_element_type=jnp.float32)      # (M, WC) f32

    def batchnorm(h, g_ref, be_ref):
        # One-pass sum / sum-of-squares stats.  The fold over the W lane
        # groups is a log2(W) XLU lane-roll butterfly, after which every lane
        # already holds the full per-channel sum, so scale/shift are computed
        # directly at (1, WC): no masked sub-vreg slice/add loop, no concat.
        s = jnp.sum(h, axis=0, keepdims=True)               # (1, WC)
        ss = jnp.sum(h * h, axis=0, keepdims=True)          # (1, WC)
        stats = jnp.concatenate([s, ss], axis=0)            # (2, WC)
        k = C
        while k < WC:                                       # static unroll
            stats = stats + pltpu.roll(stats, shift=k, axis=1)
            k *= 2
        mean = stats[0:1, :] * inv_cnt
        var = stats[1:2, :] * inv_cnt - mean * mean         # biased variance
        scale = g_ref[...] * jax.lax.rsqrt(var + EPS)       # (1, WC)
        shift = be_ref[...] - mean * scale
        return h * scale + shift

    x = x_ref[...]
    # conv1 -> bn1 -> relu   (h1 stays in vregs; never written back to VMEM)
    h1 = jnp.maximum(batchnorm(conv(x, wa_ref), g1_ref, be1_ref), 0.0)
    # conv2 -> bn2
    h2 = batchnorm(conv(h1, wb_ref), g2_ref, be2_ref)
    # residual add + relu, lane-dense store
    o_ref[...] = jnp.maximum(x + h2, 0.0)


def make_banded_weights(w_hwio, W):
    """(3, 3, Cin, Cout) HWIO -> (3*W*C, W*C) fused block-banded bf16 matrix.

    banded[dy*W*C + xin*C + ci, x*C + co] = w[dy, xin - x + 1, ci, co] when
    |xin - x| <= 1, else 0 — folding the W-direction zero padding of a
    stride-1 'SAME' 3x3 conv into the weights.  Plain XLA on the wrapper side.
    """
    C = w_hwio.shape[2]
    WC = W * C
    lane = jnp.arange(WC)
    xpos = lane // C                                  # spatial index per lane
    cpos = lane % C                                   # channel index per lane
    dx = xpos[:, None] - xpos[None, :] + 1            # (WC, WC)
    valid = (dx >= 0) & (dx <= 2)
    big = w_hwio[:, jnp.clip(dx, 0, 2), cpos[:, None], cpos[None, :]]
    banded = jnp.where(valid[None], big, 0.0)
    return banded.reshape(3 * WC, WC).astype(jnp.bfloat16)


def rb_forward(x_nchw, params):
    (w1, b1, g1, be1, w2, b2, g2, be2) = params
    del b1, b2          # conv bias cancels exactly under training-mode BN
    x = jnp.transpose(x_nchw, (0, 2, 3, 1)).astype(jnp.float32)   # -> NHWC
    N, H, W, C = x.shape
    WC, M = W * C, N * H
    assert W & (W - 1) == 0, "BN roll butterfly assumes W is a power of two"

    def tile_param(p):
        return jnp.tile(p.reshape(1, C).astype(jnp.float32), (1, W))

    args = (x.reshape(M, WC),
            make_banded_weights(w1.astype(jnp.float32), W),
            make_banded_weights(w2.astype(jnp.float32), W),
            tile_param(g1), tile_param(be1), tile_param(g2), tile_param(be2))

    # VMEM budget from actual buffer sizes (single block, no double-buffering),
    # instead of a hardcoded limit.
    vmem_bytes = sum(int(a.size) * a.dtype.itemsize for a in args) + M * WC * 4
    vmem_limit = int(min(max(2 * vmem_bytes, 4 << 20), 96 << 20))

    vmem = pl.BlockSpec(memory_space=pltpu.MemorySpace.VMEM)
    out = pl.pallas_call(
        functools.partial(rb_kernel, H=H, W=W, C=C),
        out_shape=jax.ShapeDtypeStruct((M, WC), jnp.float32),
        in_specs=[vmem] * len(args),
        out_specs=vmem,
        compiler_params=pltpu.CompilerParams(vmem_limit_bytes=vmem_limit),
    )(*args)
    return jnp.transpose(out.reshape(N, H, W, C), (0, 3, 1, 2))    # -> NCHW


def rb_reference(x_nchw, params):
    (w1, b1, g1, be1, w2, b2, g2, be2) = params
    x = jnp.transpose(x_nchw, (0, 2, 3, 1)).astype(jnp.float32)

    def conv(h, w, b):
        y = jax.lax.conv_general_dilated(
            h, w, window_strides=(1, 1), padding="SAME",
            dimension_numbers=("NHWC", "HWIO", "NHWC"),
            precision=jax.lax.Precision.HIGHEST)
        return y + b.reshape(1, 1, 1, -1)

    def bn(h, g, be):
        m = jnp.mean(h, axis=(0, 1, 2), keepdims=True)
        v = jnp.mean((h - m) ** 2, axis=(0, 1, 2), keepdims=True)
        return (h - m) * jax.lax.rsqrt(v + EPS) * g.reshape(1, 1, 1, -1) \
            + be.reshape(1, 1, 1, -1)

    h = jax.nn.relu(bn(conv(x, w1, b1), g1, be1))
    h = bn(conv(h, w2, b2), g2, be2)
    out = jax.nn.relu(x + h)
    return jnp.transpose(out, (0, 3, 1, 2))


if __name__ == "__main__":
    N, C, H, W = 2, 16, 16, 16          # nin = nout = 16
    key = jax.random.PRNGKey(0)
    kx, k0, k1, k2, k3, k4, k5, k6, k7 = jax.random.split(key, 9)

    x = jax.random.normal(kx, (N, C, H, W), jnp.float32)

    # Conv weights stored HWIO (3,3,Cin,Cout) == PyTorch OIHW transposed.
    w1 = 0.1 * jax.random.normal(k0, (3, 3, C, C), jnp.float32)
    b1 = 0.1 * jax.random.normal(k1, (C,), jnp.float32)
    g1 = 1.0 + 0.1 * jax.random.normal(k2, (C,), jnp.float32)
    be1 = 0.1 * jax.random.normal(k3, (C,), jnp.float32)
    w2 = 0.1 * jax.random.normal(k4, (3, 3, C, C), jnp.float32)
    b2 = 0.1 * jax.random.normal(k5, (C,), jnp.float32)
    g2 = 1.0 + 0.1 * jax.random.normal(k6, (C,), jnp.float32)
    be2 = 0.1 * jax.random.normal(k7, (C,), jnp.float32)
    params = (w1, b1, g1, be1, w2, b2, g2, be2)

    out = jax.block_until_ready(rb_forward(x, params))
    ref = jax.block_until_ready(rb_reference(x, params))

    assert out.shape == (N, C, H, W)
    # Tolerance sized for the bf16 MXU operand path (f32 accumulate) vs the
    # HIGHEST-precision f32 reference; structural bugs produce O(1) errors.
    assert jnp.allclose(out, ref, atol=5e-2, rtol=5e-2), \
        f"max abs err = {jnp.max(jnp.abs(out - ref))}"
    print("KERNEL_OK")
</pallas_src>

<mosaic_0001>
module attributes {stable_mosaic.version = 11 : i64} {
  func.func @rb_kernel(%arg0: memref<32x256xf32, #tpu.memory_space<vmem>>, %arg1: memref<768x256xbf16, #tpu.memory_space<vmem>>, %arg2: memref<768x256xbf16, #tpu.memory_space<vmem>>, %arg3: memref<1x256xf32, #tpu.memory_space<vmem>>, %arg4: memref<1x256xf32, #tpu.memory_space<vmem>>, %arg5: memref<1x256xf32, #tpu.memory_space<vmem>>, %arg6: memref<1x256xf32, #tpu.memory_space<vmem>>, %arg7: memref<32x256xf32, #tpu.memory_space<vmem>>) attributes {dimension_semantics = [], scalar_prefetch = 0 : i64, scratch_operands = 0 : i64, tpu.core_type = #tpu.core_type<tc>} {
    %0 = tpu.iota {dimensions = array<i32: 0>} : vector<32x1xi32>
    %c16_i32 = arith.constant 16 : i32
    %c0_i32 = arith.constant 0 : i32
    %1 = arith.cmpi eq, %c16_i32, %c0_i32 : i32
    %c1_i32 = arith.constant 1 : i32
    %2 = arith.select %1, %c1_i32, %c16_i32 : i32
    %3 = vector.broadcast %2 : i32 to vector<32x1xi32>
    %4 = arith.remsi %0, %3 : vector<32x1xi32>
    %c0_i32_0 = arith.constant 0 : i32
    %5 = vector.broadcast %c0_i32_0 : i32 to vector<32x1xi32>
    %6 = arith.cmpi ne, %4, %5 : vector<32x1xi32>
    %c0_i32_1 = arith.constant 0 : i32
    %7 = vector.broadcast %c0_i32_1 : i32 to vector<32x1xi32>
    %8 = arith.cmpi slt, %4, %7 : vector<32x1xi32>
    %c0_i32_2 = arith.constant 0 : i32
    %9 = arith.cmpi slt, %2, %c0_i32_2 : i32
    %10 = vector.broadcast %9 : i1 to vector<32x1xi1>
    %11 = vector.broadcast %10 : vector<32x1xi1> to vector<32x1xi1>
    %12 = arith.xori %8, %11 : vector<32x1xi1>
    %13 = arith.andi %12, %6 : vector<32x1xi1>
    %14 = vector.broadcast %2 : i32 to vector<32x1xi32>
    %15 = arith.addi %4, %14 : vector<32x1xi32>
    %16 = arith.select %13, %15, %4 : vector<32x1xi1>, vector<32x1xi32>
    %c0_i32_3 = arith.constant 0 : i32
    %17 = vector.broadcast %c0_i32_3 : i32 to vector<32x1xi32>
    %18 = arith.cmpi ne, %16, %17 : vector<32x1xi32>
    %19 = arith.extui %18 : vector<32x1xi1> to vector<32x1xi32>
    %20 = arith.sitofp %19 : vector<32x1xi32> to vector<32x1xf32>
    %c16_i32_4 = arith.constant 16 : i32
    %c0_i32_5 = arith.constant 0 : i32
    %21 = arith.cmpi eq, %c16_i32_4, %c0_i32_5 : i32
    %c1_i32_6 = arith.constant 1 : i32
    %22 = arith.select %21, %c1_i32_6, %c16_i32_4 : i32
    %23 = vector.broadcast %22 : i32 to vector<32x1xi32>
    %24 = arith.remsi %0, %23 : vector<32x1xi32>
    %c0_i32_7 = arith.constant 0 : i32
    %25 = vector.broadcast %c0_i32_7 : i32 to vector<32x1xi32>
    %26 = arith.cmpi ne, %24, %25 : vector<32x1xi32>
    %c0_i32_8 = arith.constant 0 : i32
    %27 = vector.broadcast %c0_i32_8 : i32 to vector<32x1xi32>
    %28 = arith.cmpi slt, %24, %27 : vector<32x1xi32>
    %c0_i32_9 = arith.constant 0 : i32
    %29 = arith.cmpi slt, %22, %c0_i32_9 : i32
    %30 = vector.broadcast %29 : i1 to vector<32x1xi1>
    %31 = vector.broadcast %30 : vector<32x1xi1> to vector<32x1xi1>
    %32 = arith.xori %28, %31 : vector<32x1xi1>
    %33 = arith.andi %32, %26 : vector<32x1xi1>
    %34 = vector.broadcast %22 : i32 to vector<32x1xi32>
    %35 = arith.addi %24, %34 : vector<32x1xi32>
    %36 = arith.select %33, %35, %24 : vector<32x1xi1>, vector<32x1xi32>
    %c15_i32 = arith.constant 15 : i32
    %37 = vector.broadcast %c15_i32 : i32 to vector<32x1xi32>
    %38 = arith.cmpi ne, %36, %37 : vector<32x1xi32>
    %39 = arith.extui %38 : vector<32x1xi1> to vector<32x1xi32>
    %40 = arith.sitofp %39 : vector<32x1xi32> to vector<32x1xf32>
    %c0 = arith.constant 0 : index
    %c0_10 = arith.constant 0 : index
    %41 = vector.load %arg0[%c0, %c0_10] : memref<32x256xf32, #tpu.memory_space<vmem>>, vector<32x256xf32>
    %c1_i32_11 = arith.constant 1 : i32
    %42 = tpu.dynamic_rotate %41 by %c1_i32_11 dim 0 : vector<32x256xf32>, i32 -> vector<32x256xf32>
    %43 = vector.broadcast %20 : vector<32x1xf32> to vector<32x256xf32>
    %44 = arith.mulf %42, %43 : vector<32x256xf32>
    %c31_i32 = arith.constant 31 : i32
    %45 = tpu.dynamic_rotate %41 by %c31_i32 dim 0 : vector<32x256xf32>, i32 -> vector<32x256xf32>
    %46 = vector.broadcast %40 : vector<32x1xf32> to vector<32x256xf32>
    %47 = arith.mulf %45, %46 : vector<32x256xf32>
    %48 = tpu.concatenate %44, %41, %47 in 1 : vector<32x256xf32>, vector<32x256xf32>, vector<32x256xf32> -> vector<32x768xf32>
    %49 = arith.truncf %48 : vector<32x768xf32> to vector<32x768xbf16>
    %c0_12 = arith.constant 0 : index
    %c0_13 = arith.constant 0 : index
    %50 = vector.load %arg1[%c0_12, %c0_13] : memref<768x256xbf16, #tpu.memory_space<vmem>>, vector<768x256xbf16>
    %cst = arith.constant dense<0.000000e+00> : vector<32x256xf32>
    %51 = tpu.matmul %49, %50, %cst {dimension_numbers = #tpu.dot_dimension_numbers<[1], [0], [0], [1], [0, 0, 1, 1], [], []>} : vector<32x768xbf16>, vector<768x256xbf16>, vector<32x256xf32> -> vector<32x256xf32>
    %cst_14 = arith.constant dense<0.000000e+00> : vector<256xf32>
    %52 = vector.multi_reduction <add>, %51, %cst_14 [0] : vector<32x256xf32> to vector<256xf32>
    %53 = vector.shape_cast %52 : vector<256xf32> to vector<1x256xf32>
    %54 = arith.mulf %51, %51 : vector<32x256xf32>
    %cst_15 = arith.constant dense<0.000000e+00> : vector<256xf32>
    %55 = vector.multi_reduction <add>, %54, %cst_15 [0] : vector<32x256xf32> to vector<256xf32>
    %56 = vector.shape_cast %55 : vector<256xf32> to vector<1x256xf32>
    %57 = tpu.concatenate %53, %56 in 0 : vector<1x256xf32>, vector<1x256xf32> -> vector<2x256xf32>
    %c16_i32_16 = arith.constant 16 : i32
    %58 = tpu.dynamic_rotate %57 by %c16_i32_16 dim 1 : vector<2x256xf32>, i32 -> vector<2x256xf32>
    %59 = arith.addf %57, %58 : vector<2x256xf32>
    %c32_i32 = arith.constant 32 : i32
    %60 = tpu.dynamic_rotate %59 by %c32_i32 dim 1 : vector<2x256xf32>, i32 -> vector<2x256xf32>
    %61 = arith.addf %59, %60 : vector<2x256xf32>
    %c64_i32 = arith.constant 64 : i32
    %62 = tpu.dynamic_rotate %61 by %c64_i32 dim 1 : vector<2x256xf32>, i32 -> vector<2x256xf32>
    %63 = arith.addf %61, %62 : vector<2x256xf32>
    %c128_i32 = arith.constant 128 : i32
    %64 = tpu.dynamic_rotate %63 by %c128_i32 dim 1 : vector<2x256xf32>, i32 -> vector<2x256xf32>
    %65 = arith.addf %63, %64 : vector<2x256xf32>
    %66 = vector.extract_strided_slice %65 {offsets = [0, 0], sizes = [1, 256], strides = [1, 1]} : vector<2x256xf32> to vector<1x256xf32>
    %cst_17 = arith.constant 0.001953125 : f32
    %67 = vector.broadcast %cst_17 : f32 to vector<1x256xf32>
    %68 = arith.mulf %66, %67 : vector<1x256xf32>
    %69 = vector.extract_strided_slice %65 {offsets = [1, 0], sizes = [1, 256], strides = [1, 1]} : vector<2x256xf32> to vector<1x256xf32>
    %cst_18 = arith.constant 0.001953125 : f32
    %70 = vector.broadcast %cst_18 : f32 to vector<1x256xf32>
    %71 = arith.mulf %69, %70 : vector<1x256xf32>
    %72 = arith.mulf %68, %68 : vector<1x256xf32>
    %73 = arith.subf %71, %72 : vector<1x256xf32>
    %c0_19 = arith.constant 0 : index
    %c0_20 = arith.constant 0 : index
    %74 = vector.load %arg3[%c0_19, %c0_20] : memref<1x256xf32, #tpu.memory_space<vmem>>, vector<1x256xf32>
    %cst_21 = arith.constant 9.99999974E-6 : f32
    %75 = vector.broadcast %cst_21 : f32 to vector<1x256xf32>
    %76 = arith.addf %73, %75 : vector<1x256xf32>
    %77 = math.rsqrt %76 : vector<1x256xf32>
    %78 = arith.mulf %74, %77 : vector<1x256xf32>
    %c0_22 = arith.constant 0 : index
    %c0_23 = arith.constant 0 : index
    %79 = vector.load %arg4[%c0_22, %c0_23] : memref<1x256xf32, #tpu.memory_space<vmem>>, vector<1x256xf32>
    %80 = arith.mulf %68, %78 : vector<1x256xf32>
    %81 = arith.subf %79, %80 : vector<1x256xf32>
    %82 = vector.broadcast %78 : vector<1x256xf32> to vector<32x256xf32>
    %83 = arith.mulf %51, %82 : vector<32x256xf32>
    %84 = vector.broadcast %81 : vector<1x256xf32> to vector<32x256xf32>
    %85 = arith.addf %83, %84 : vector<32x256xf32>
    %cst_24 = arith.constant 0.000000e+00 : f32
    %86 = vector.broadcast %cst_24 : f32 to vector<32x256xf32>
    %87 = arith.maximumf %85, %86 : vector<32x256xf32>
    %c1_i32_25 = arith.constant 1 : i32
    %88 = tpu.dynamic_rotate %87 by %c1_i32_25 dim 0 : vector<32x256xf32>, i32 -> vector<32x256xf32>
    %89 = vector.broadcast %20 : vector<32x1xf32> to vector<32x256xf32>
    %90 = arith.mulf %88, %89 : vector<32x256xf32>
    %c31_i32_26 = arith.constant 31 : i32
    %91 = tpu.dynamic_rotate %87 by %c31_i32_26 dim 0 : vector<32x256xf32>, i32 -> vector<32x256xf32>
    %92 = vector.broadcast %40 : vector<32x1xf32> to vector<32x256xf32>
    %93 = arith.mulf %91, %92 : vector<32x256xf32>
    %94 = tpu.concatenate %90, %87, %93 in 1 : vector<32x256xf32>, vector<32x256xf32>, vector<32x256xf32> -> vector<32x768xf32>
    %95 = arith.truncf %94 : vector<32x768xf32> to vector<32x768xbf16>
    %c0_27 = arith.constant 0 : index
    %c0_28 = arith.constant 0 : index
    %96 = vector.load %arg2[%c0_27, %c0_28] : memref<768x256xbf16, #tpu.memory_space<vmem>>, vector<768x256xbf16>
    %cst_29 = arith.constant dense<0.000000e+00> : vector<32x256xf32>
    %97 = tpu.matmul %95, %96, %cst_29 {dimension_numbers = #tpu.dot_dimension_numbers<[1], [0], [0], [1], [0, 0, 1, 1], [], []>} : vector<32x768xbf16>, vector<768x256xbf16>, vector<32x256xf32> -> vector<32x256xf32>
    %cst_30 = arith.constant dense<0.000000e+00> : vector<256xf32>
    %98 = vector.multi_reduction <add>, %97, %cst_30 [0] : vector<32x256xf32> to vector<256xf32>
    %99 = vector.shape_cast %98 : vector<256xf32> to vector<1x256xf32>
    %100 = arith.mulf %97, %97 : vector<32x256xf32>
    %cst_31 = arith.constant dense<0.000000e+00> : vector<256xf32>
    %101 = vector.multi_reduction <add>, %100, %cst_31 [0] : vector<32x256xf32> to vector<256xf32>
    %102 = vector.shape_cast %101 : vector<256xf32> to vector<1x256xf32>
    %103 = tpu.concatenate %99, %102 in 0 : vector<1x256xf32>, vector<1x256xf32> -> vector<2x256xf32>
    %c16_i32_32 = arith.constant 16 : i32
    %104 = tpu.dynamic_rotate %103 by %c16_i32_32 dim 1 : vector<2x256xf32>, i32 -> vector<2x256xf32>
    %105 = arith.addf %103, %104 : vector<2x256xf32>
    %c32_i32_33 = arith.constant 32 : i32
    %106 = tpu.dynamic_rotate %105 by %c32_i32_33 dim 1 : vector<2x256xf32>, i32 -> vector<2x256xf32>
    %107 = arith.addf %105, %106 : vector<2x256xf32>
    %c64_i32_34 = arith.constant 64 : i32
    %108 = tpu.dynamic_rotate %107 by %c64_i32_34 dim 1 : vector<2x256xf32>, i32 -> vector<2x256xf32>
    %109 = arith.addf %107, %108 : vector<2x256xf32>
    %c128_i32_35 = arith.constant 128 : i32
    %110 = tpu.dynamic_rotate %109 by %c128_i32_35 dim 1 : vector<2x256xf32>, i32 -> vector<2x256xf32>
    %111 = arith.addf %109, %110 : vector<2x256xf32>
    %112 = vector.extract_strided_slice %111 {offsets = [0, 0], sizes = [1, 256], strides = [1, 1]} : vector<2x256xf32> to vector<1x256xf32>
    %cst_36 = arith.constant 0.001953125 : f32
    %113 = vector.broadcast %cst_36 : f32 to vector<1x256xf32>
    %114 = arith.mulf %112, %113 : vector<1x256xf32>
    %115 = vector.extract_strided_slice %111 {offsets = [1, 0], sizes = [1, 256], strides = [1, 1]} : vector<2x256xf32> to vector<1x256xf32>
    %cst_37 = arith.constant 0.001953125 : f32
    %116 = vector.broadcast %cst_37 : f32 to vector<1x256xf32>
    %117 = arith.mulf %115, %116 : vector<1x256xf32>
    %118 = arith.mulf %114, %114 : vector<1x256xf32>
    %119 = arith.subf %117, %118 : vector<1x256xf32>
    %c0_38 = arith.constant 0 : index
    %c0_39 = arith.constant 0 : index
    %120 = vector.load %arg5[%c0_38, %c0_39] : memref<1x256xf32, #tpu.memory_space<vmem>>, vector<1x256xf32>
    %cst_40 = arith.constant 9.99999974E-6 : f32
    %121 = vector.broadcast %cst_40 : f32 to vector<1x256xf32>
    %122 = arith.addf %119, %121 : vector<1x256xf32>
    %123 = math.rsqrt %122 : vector<1x256xf32>
    %124 = arith.mulf %120, %123 : vector<1x256xf32>
    %c0_41 = arith.constant 0 : index
    %c0_42 = arith.constant 0 : index
    %125 = vector.load %arg6[%c0_41, %c0_42] : memref<1x256xf32, #tpu.memory_space<vmem>>, vector<1x256xf32>
    %126 = arith.mulf %114, %124 : vector<1x256xf32>
    %127 = arith.subf %125, %126 : vector<1x256xf32>
    %128 = vector.broadcast %124 : vector<1x256xf32> to vector<32x256xf32>
    %129 = arith.mulf %97, %128 : vector<32x256xf32>
    %130 = vector.broadcast %127 : vector<1x256xf32> to vector<32x256xf32>
    %131 = arith.addf %129, %130 : vector<32x256xf32>
    %132 = arith.addf %41, %131 : vector<32x256xf32>
    %cst_43 = arith.constant 0.000000e+00 : f32
    %133 = vector.broadcast %cst_43 : f32 to vector<32x256xf32>
    %134 = arith.maximumf %132, %133 : vector<32x256xf32>
    %c0_44 = arith.constant 0 : index
    %c0_45 = arith.constant 0 : index
    %135 = vector.load %arg7[%c0_44, %c0_45] : memref<32x256xf32, #tpu.memory_space<vmem>>, vector<32x256xf32>
    tpu.vector_store %arg7[%c0_44, %c0_45], %134 {strides = array<i32>} : memref<32x256xf32, #tpu.memory_space<vmem>>, vector<32x256xf32>,
    return
  }
}

</mosaic_0001>

<llo_original>
// kernel: tpu_custom_call.1
$region0: #{tpu_custom_call.1}
  #allocation0 [shape = 'u32[]', space=smem, size = 0x4, offset = 0x4, fixed_abs, tag = 'smem constant byte address 0x4 - core index']
  #allocation1 [shape = 'u32[144,128]{1,0:T(1,128)}', space=vmem, size = 0x12000, scoped, tag = 'internal scratch']
  %s0 = inlined_call_operand.hbm [shape: f32[32,256], index: 0, kind: input, shape index: {}]
  %s1 = inlined_call_operand.hbm [shape: bf16[768,256], index: 1, kind: input, shape index: {}]
  %s2 = inlined_call_operand.hbm [shape: bf16[768,256], index: 2, kind: input, shape index: {}]
  %s3 = inlined_call_operand.vmem [shape: f32[1,256], index: 3, kind: input, shape index: {}]
  %s4 = inlined_call_operand.vmem [shape: f32[1,256], index: 4, kind: input, shape index: {}]
  %s5 = inlined_call_operand.vmem [shape: f32[1,256], index: 5, kind: input, shape index: {}]
  %s6 = inlined_call_operand.vmem [shape: f32[1,256], index: 6, kind: input, shape index: {}]
  %s7 = inlined_call_operand.hbm [shape: f32[32,256], index: 7, kind: output, shape index: {}]
  %s8 = sld [smem:[#allocation0]]
  $region50: #{tpu_custom_call.1} parent=0
    _
  %s10 = ssub.s32 1, %s8
  %s11 = scalar_select 0, %s10, %s8
  $region1: #{tpu_custom_call.1} parent=0
    #allocation2 [shape = 'u8[32768]{0}', space=vmem, size = 0x8000, scoped, tag = 'input window, operand 0, single buffered']
    #allocation3 [shape = 's32[1]{0}', space=sflag, size = 0x4, scoped, tag = 'scoped memory for tpu_custom_call.1']
    #allocation4 [shape = 's32[1]{0}', space=sflag, size = 0x4, scoped, tag = 'scoped memory for tpu_custom_call.1']
    #allocation5 [shape = 'u8[393216]{0}', space=vmem, size = 0x60000, scoped, tag = 'input window, operand 1, single buffered']
    #allocation6 [shape = 's32[1]{0}', space=sflag, size = 0x4, scoped, tag = 'scoped memory for tpu_custom_call.1']
    #allocation7 [shape = 'u8[393216]{0}', space=vmem, size = 0x60000, scoped, tag = 'input window, operand 2, single buffered']
    #allocation8 [shape = 'u8[32768]{0}', space=vmem, size = 0x8000, scoped, tag = 'output window, operand 0, single buffered']
    %12 = vsyncpa [#allocation3], 0
    %13 = vsyncpa [#allocation6], 0
    %14 = vsyncpa [#allocation4], 0
    // Predicated region
    $region2: #{tpu_custom_call.1} parent=1 // pred_check
      _
    $region3: #{tpu_custom_call.1} parent=1 // pred_check_branch
      %16 = sbr.rel (0) target = $region5
    $region4: #{tpu_custom_call.1} parent=1 // pred_region
      %s18 = ssub.s32 1024, 1024
      %19 = vsyncadd [#allocation3], %s18
      %s20 = sshll.u32 [#allocation2], 4
      %s21 = int_to_ptr.vmem [resolvable:$true] %s20
      %26 = dma.hbm_to_vmem [thread:$0]  %s0, 1024, %s21, [#allocation3], 256, 256, 16
    $region5: #{tpu_custom_call.1} parent=1 // pred_fallthru
      _
    // Predicated region
    $region6: #{tpu_custom_call.1} parent=1 // pred_check
      _
    $region7: #{tpu_custom_call.1} parent=1 // pred_check_branch
      %28 = sbr.rel (0) target = $region9
    $region8: #{tpu_custom_call.1} parent=1 // pred_region
      %s30 = ssub.s32 12288, 12288
      %31 = vsyncadd [#allocation6], %s30
      %s32 = sshll.u32 [#allocation5], 4
      %s33 = int_to_ptr.vmem [resolvable:$true] %s32
      %38 = dma.hbm_to_vmem [thread:$0]  %s1, 12288, %s33, [#allocation6], 128, 128, 8
    $region9: #{tpu_custom_call.1} parent=1 // pred_fallthru
      _
    // Predicated region
    $region10: #{tpu_custom_call.1} parent=1 // pred_check
      _
    $region11: #{tpu_custom_call.1} parent=1 // pred_check_branch
      %40 = sbr.rel (0) target = $region13
    $region12: #{tpu_custom_call.1} parent=1 // pred_region
      %s42 = ssub.s32 12288, 12288
      %43 = vsyncadd [#allocation6], %s42
      %s44 = sshll.u32 [#allocation7], 4
      %s45 = int_to_ptr.vmem [resolvable:$true] %s44
      %50 = dma.hbm_to_vmem [thread:$0]  %s2, 12288, %s45, [#allocation6], 128, 128, 8
    $region13: #{tpu_custom_call.1} parent=1 // pred_fallthru
      _
    // Predicated region
    $region14: #{tpu_custom_call.1} parent=1 // pred_check
      _
    $region15: #{tpu_custom_call.1} parent=1 // pred_check_branch
      %52 = sbr.rel (0) target = $region17
    $region16: #{tpu_custom_call.1} parent=1 // pred_region
      _
    $region17: #{tpu_custom_call.1} parent=1 // pred_fallthru
      _
    // Predicated region
    $region18: #{tpu_custom_call.1} parent=1 // pred_check
      _
    $region19: #{tpu_custom_call.1} parent=1 // pred_check_branch
      %54 = sbr.rel (0) target = $region21
    $region20: #{tpu_custom_call.1} parent=1 // pred_region
      _
    $region21: #{tpu_custom_call.1} parent=1 // pred_fallthru
      _
    // Predicated region
    $region22: #{tpu_custom_call.1} parent=1 // pred_check
      _
    $region23: #{tpu_custom_call.1} parent=1 // pred_check_branch
      %56 = sbr.rel (0) target = $region25
    $region24: #{tpu_custom_call.1} parent=1 // pred_region
      _
    $region25: #{tpu_custom_call.1} parent=1 // pred_fallthru
      _
    // Predicated region
    $region26: #{tpu_custom_call.1} parent=1 // pred_check
      _
    $region27: #{tpu_custom_call.1} parent=1 // pred_check_branch
      %58 = sbr.rel (0) target = $region29
    $region28: #{tpu_custom_call.1} parent=1 // pred_region
      _
    $region29: #{tpu_custom_call.1} parent=1 // pred_fallthru
      _
    // Predicated region
    $region30: #{tpu_custom_call.1} parent=1 // pred_check
      _
    $region31: #{tpu_custom_call.1} parent=1 // pred_check_branch
      %60 = sbr.rel (0) target = $region33
    $region32: #{tpu_custom_call.1} parent=1 // pred_region
      %61 = dma.done [#allocation3], 1024
    $region33: #{tpu_custom_call.1} parent=1 // pred_fallthru
      _
    // Predicated region
    $region34: #{tpu_custom_call.1} parent=1 // pred_check
      _
    $region35: #{tpu_custom_call.1} parent=1 // pred_check_branch
      %63 = sbr.rel (0) target = $region37
    $region36: #{tpu_custom_call.1} parent=1 // pred_region
      %64 = dma.done [#allocation6], 12288
    $region37: #{tpu_custom_call.1} parent=1 // pred_fallthru
      _
    // Predicated region
    $region38: #{tpu_custom_call.1} parent=1 // pred_check
      _
    $region39: #{tpu_custom_call.1} parent=1 // pred_check_branch
      %66 = sbr.rel (0) target = $region41
    $region40: #{tpu_custom_call.1} parent=1 // pred_region
      %67 = dma.done [#allocation6], 12288
    $region41: #{tpu_custom_call.1} parent=1 // pred_fallthru
      _
    %v68 = vlaneseq
    %v69 = vshrl.u32 %v68, 7
    %v70 = vadd.s32 %v69, 8
    %v71 = vadd.s32 %v69, 16
    %v72 = vadd.s32 %v69, 24
    %vm73 = vcmp.lt.s32.totalorder %v69, 0
    %v74 = vsub.s32 0, %v69
    %v75 = vsel %vm73, %v74, %v69
    %v76 = vshrl.u32 %v75, 4
    %v77 = vand.u32 %v75, 15
    %v78 = vsub.s32 0, %v77
    %v79 = vsel %vm73, %v78, %v77
    %vm80 = vcmp.lt.s32.totalorder %v70, 0
    %v81 = vsub.s32 0, %v70
    %v82 = vsel %vm80, %v81, %v70
    %v83 = vshrl.u32 %v82, 4
    %v84 = vand.u32 %v82, 15
    %v85 = vsub.s32 0, %v84
    %v86 = vsel %vm80, %v85, %v84
    %vm87 = vcmp.lt.s32.totalorder %v71, 0
    %v88 = vsub.s32 0, %v71
    %v89 = vsel %vm87, %v88, %v71
    %v90 = vshrl.u32 %v89, 4
    %v91 = vand.u32 %v89, 15
    %v92 = vsub.s32 0, %v91
    %v93 = vsel %vm87, %v92, %v91
    %vm94 = vcmp.lt.s32.totalorder %v72, 0
    %v95 = vsub.s32 0, %v72
    %v96 = vsel %vm94, %v95, %v72
    %v97 = vshrl.u32 %v96, 4
    %v98 = vand.u32 %v96, 15
    %v99 = vsub.s32 0, %v98
    %v100 = vsel %vm94, %v99, %v98
    %vm101 = vcmp.ne.s32.totalorder %v79, 0
    %vm102 = vcmp.ne.s32.totalorder %v86, 0
    %vm103 = vcmp.ne.s32.totalorder %v93, 0
    %vm104 = vcmp.ne.s32.totalorder %v100, 0
    %vm105 = vcmp.lt.s32.totalorder %v79, 0
    %vm106 = vcmp.lt.s32.totalorder %v86, 0
    %vm107 = vcmp.lt.s32.totalorder %v93, 0
    %vm108 = vcmp.lt.s32.totalorder %v100, 0
    %vm109 = vmand %vm105, %vm101
    %vm110 = vmand %vm106, %vm102
    %vm111 = vmand %vm107, %vm103
    %vm112 = vmand %vm108, %vm104
    %v113 = vadd.s32 %v79, 16
    %v114 = vadd.s32 %v86, 16
    %v115 = vadd.s32 %v93, 16
    %v116 = vadd.s32 %v100, 16
    %v117 = vsel %vm109, %v113, %v79
    %v118 = vsel %vm110, %v114, %v86
    %v119 = vsel %vm111, %v115, %v93
    %v120 = vsel %vm112, %v116, %v100
    %vm121 = vcmp.ne.s32.totalorder %v117, 0
    %vm122 = vcmp.ne.s32.totalorder %v118, 0
    %vm123 = vcmp.ne.s32.totalorder %v119, 0
    %vm124 = vcmp.ne.s32.totalorder %v120, 0
    %v125 = vsel %vm121, 1, 0
    %v126 = vsel %vm122, 1, 0
    %v127 = vsel %vm123, 1, 0
    %v128 = vsel %vm124, 1, 0
    %v129 = vcvt.s32.f32 %v125
    %v130 = vcvt.s32.f32 %v126
    %v131 = vcvt.s32.f32 %v127
    %v132 = vcvt.s32.f32 %v128
    %vm133 = vcmp.ne.s32.totalorder %v117, 15
    %vm134 = vcmp.ne.s32.totalorder %v118, 15
    %vm135 = vcmp.ne.s32.totalorder %v119, 15
    %vm136 = vcmp.ne.s32.totalorder %v120, 15
    %v137 = vsel %vm133, 1, 0
    %v138 = vsel %vm134, 1, 0
    %v139 = vsel %vm135, 1, 0
    %v140 = vsel %vm136, 1, 0
    %v141 = vcvt.s32.f32 %v137
    %v142 = vcvt.s32.f32 %v138
    %v143 = vcvt.s32.f32 %v139
    %v144 = vcvt.s32.f32 %v140
    %v145 = vld [vmem:[#allocation2] sm:$0xff]
    %v146 = vld [vmem:[#allocation2 + $0x8] sm:$0xff]
    %v147 = vld [vmem:[#allocation2 + $0x10] sm:$0xff]
    %v148 = vld [vmem:[#allocation2 + $0x18] sm:$0xff]
    %v149 = vld [vmem:[#allocation2 + $0x20] sm:$0xff]
    %v150 = vld [vmem:[#allocation2 + $0x28] sm:$0xff]
    %v151 = vld [vmem:[#allocation2 + $0x30] sm:$0xff]
    %v152 = vld [vmem:[#allocation2 + $0x38] sm:$0xff]
    %v153 = vrot.slane %v145, 7
    %v154 = vrot.slane %v146, 7
    %v155 = vrot.slane %v147, 7
    %v156 = vrot.slane %v148, 7
    %v157 = vrot.slane %v149, 7
    %v158 = vrot.slane %v150, 7
    %v159 = vrot.slane %v151, 7
    %v160 = vrot.slane %v152, 7
    %vm161 = vcmp.lt.s32.totalorder %v69, 1
    %v162 = vsel %vm161, %v157, %v159
    %v163 = vsel %vm161, %v158, %v160
    %v164 = vsel %vm161, %v155, %v157
    %v165 = vsel %vm161, %v156, %v158
    %v166 = vsel %vm161, %v153, %v155
    %v167 = vsel %vm161, %v154, %v156
    %v168 = vsel %vm161, %v159, %v153
    %v169 = vsel %vm161, %v160, %v154
    %v170 = vmul.f32 %v168, %v129
    %v171 = vmul.f32 %v169, %v129
    %v172 = vmul.f32 %v166, %v130
    %v173 = vmul.f32 %v167, %v130
    %v174 = vmul.f32 %v164, %v131
    %v175 = vmul.f32 %v165, %v131
    %v176 = vmul.f32 %v162, %v132
    %v177 = vmul.f32 %v163, %v132
    %v178 = vrot.slane %v145, 1
    %v179 = vrot.slane %v146, 1
    %v180 = vrot.slane %v147, 1
    %v181 = vrot.slane %v148, 1
    %v182 = vrot.slane %v149, 1
    %v183 = vrot.slane %v150, 1
    %v184 = vrot.slane %v151, 1
    %v185 = vrot.slane %v152, 1
    %vm186 = vcmp.lt.s32.totalorder %v69, 7
    %v187 = vsel %vm186, %v182, %v184
    %v188 = vsel %vm186, %v183, %v185
    %v189 = vsel %vm186, %v180, %v182
    %v190 = vsel %vm186, %v181, %v183
    %v191 = vsel %vm186, %v178, %v180
    %v192 = vsel %vm186, %v179, %v181
    %v193 = vsel %vm186, %v184, %v178
    %v194 = vsel %vm186, %v185, %v179
    %v195 = vmul.f32 %v191, %v141
    %v196 = vmul.f32 %v192, %v141
    %v197 = vmul.f32 %v189, %v142
    %v198 = vmul.f32 %v190, %v142
    %v199 = vmul.f32 %v187, %v143
    %v200 = vmul.f32 %v188, %v143
    %v201 = vmul.f32 %v193, %v144
    %v202 = vmul.f32 %v194, %v144
    %v203 = vpack.c.bf16 %v172, %v170
    %v204 = vpack.c.bf16 %v173, %v171
    %v205 = vpack.c.bf16 %v147, %v145
    %v206 = vpack.c.bf16 %v148, %v146
    %v207 = vpack.c.bf16 %v197, %v195
    %v208 = vpack.c.bf16 %v198, %v196
    %v209 = vpack.c.bf16 %v176, %v174
    %v210 = vpack.c.bf16 %v177, %v175
    %v211 = vpack.c.bf16 %v151, %v149
    %v212 = vpack.c.bf16 %v152, %v150
    %v213 = vpack.c.bf16 %v201, %v199
    %v214 = vpack.c.bf16 %v202, %v200
    %v215 = vld [vmem:[#allocation5] sm:$0xff]
    %v216 = vld [vmem:[#allocation5 + $0x8] sm:$0xff]
    %v217 = vld [vmem:[#allocation5 + $0x10] sm:$0xff]
    %v218 = vld [vmem:[#allocation5 + $0x18] sm:$0xff]
    %v219 = vld [vmem:[#allocation5 + $0x20] sm:$0xff]
    %v220 = vld [vmem:[#allocation5 + $0x28] sm:$0xff]
    %v221 = vld [vmem:[#allocation5 + $0x30] sm:$0xff]
    %v222 = vld [vmem:[#allocation5 + $0x38] sm:$0xff]
    %v223 = vld [vmem:[#allocation5 + $0x40] sm:$0xff]
    %v224 = vld [vmem:[#allocation5 + $0x48] sm:$0xff]
    %v225 = vld [vmem:[#allocation5 + $0x50] sm:$0xff]
    %v226 = vld [vmem:[#allocation5 + $0x58] sm:$0xff]
    %v227 = vld [vmem:[#allocation5 + $0x60] sm:$0xff]
    %v228 = vld [vmem:[#allocation5 + $0x68] sm:$0xff]
    %v229 = vld [vmem:[#allocation5 + $0x70] sm:$0xff]
    %v230 = vld [vmem:[#allocation5 + $0x78] sm:$0xff]
    %v231 = vld [vmem:[#allocation5 + $0x80] sm:$0xff]
    %v232 = vld [vmem:[#allocation5 + $0x88] sm:$0xff]
    %v233 = vld [vmem:[#allocation5 + $0x90] sm:$0xff]
    %v234 = vld [vmem:[#allocation5 + $0x98] sm:$0xff]
    %v235 = vld [vmem:[#allocation5 + $0xa0] sm:$0xff]
    %v236 = vld [vmem:[#allocation5 + $0xa8] sm:$0xff]
    %v237 = vld [vmem:[#allocation5 + $0xb0] sm:$0xff]
    %v238 = vld [vmem:[#allocation5 + $0xb8] sm:$0xff]
    %v239 = vld [vmem:[#allocation5 + $0xc0] sm:$0xff]
    %v240 = vld [vmem:[#allocation5 + $0xc8] sm:$0xff]
    %v241 = vld [vmem:[#allocation5 + $0xd0] sm:$0xff]
    %v242 = vld [vmem:[#allocation5 + $0xd8] sm:$0xff]
    %v243 = vld [vmem:[#allocation5 + $0xe0] sm:$0xff]
    %v244 = vld [vmem:[#allocation5 + $0xe8] sm:$0xff]
    %v245 = vld [vmem:[#allocation5 + $0xf0] sm:$0xff]
    %v246 = vld [vmem:[#allocation5 + $0xf8] sm:$0xff]
    %v247 = vld [vmem:[#allocation5 + $0x100] sm:$0xff]
    %v248 = vld [vmem:[#allocation5 + $0x108] sm:$0xff]
    %v249 = vld [vmem:[#allocation5 + $0x110] sm:$0xff]
    %v250 = vld [vmem:[#allocation5 + $0x118] sm:$0xff]
    %v251 = vld [vmem:[#allocation5 + $0x120] sm:$0xff]
    %v252 = vld [vmem:[#allocation5 + $0x128] sm:$0xff]
    %v253 = vld [vmem:[#allocation5 + $0x130] sm:$0xff]
    %v254 = vld [vmem:[#allocation5 + $0x138] sm:$0xff]
    %v255 = vld [vmem:[#allocation5 + $0x140] sm:$0xff]
    %v256 = vld [vmem:[#allocation5 + $0x148] sm:$0xff]
    %v257 = vld [vmem:[#allocation5 + $0x150] sm:$0xff]
    %v258 = vld [vmem:[#allocation5 + $0x158] sm:$0xff]
    %v259 = vld [vmem:[#allocation5 + $0x160] sm:$0xff]
    %v260 = vld [vmem:[#allocation5 + $0x168] sm:$0xff]
    %v261 = vld [vmem:[#allocation5 + $0x170] sm:$0xff]
    %v262 = vld [vmem:[#allocation5 + $0x178] sm:$0xff]
    %v263 = vld [vmem:[#allocation5 + $0x180] sm:$0xff]
    %v264 = vld [vmem:[#allocation5 + $0x188] sm:$0xff]
    %v265 = vld [vmem:[#allocation5 + $0x190] sm:$0xff]
    %v266 = vld [vmem:[#allocation5 + $0x198] sm:$0xff]
    %v267 = vld [vmem:[#allocation5 + $0x1a0] sm:$0xff]
    %v268 = vld [vmem:[#allocation5 + $0x1a8] sm:$0xff]
    %v269 = vld [vmem:[#allocation5 + $0x1b0] sm:$0xff]
    %v270 = vld [vmem:[#allocation5 + $0x1b8] sm:$0xff]
    %v271 = vld [vmem:[#allocation5 + $0x1c0] sm:$0xff]
    %v272 = vld [vmem:[#allocation5 + $0x1c8] sm:$0xff]
    %v273 = vld [vmem:[#allocation5 + $0x1d0] sm:$0xff]
    %v274 = vld [vmem:[#allocation5 + $0x1d8] sm:$0xff]
    %v275 = vld [vmem:[#allocation5 + $0x1e0] sm:$0xff]
    %v276 = vld [vmem:[#allocation5 + $0x1e8] sm:$0xff]
    %v277 = vld [vmem:[#allocation5 + $0x1f0] sm:$0xff]
    %v278 = vld [vmem:[#allocation5 + $0x1f8] sm:$0xff]
    %v279 = vld [vmem:[#allocation5 + $0x200] sm:$0xff]
    %v280 = vld [vmem:[#allocation5 + $0x208] sm:$0xff]
    %v281 = vld [vmem:[#allocation5 + $0x210] sm:$0xff]
    %v282 = vld [vmem:[#allocation5 + $0x218] sm:$0xff]
    %v283 = vld [vmem:[#allocation5 + $0x220] sm:$0xff]
    %v284 = vld [vmem:[#allocation5 + $0x228] sm:$0xff]
    %v285 = vld [vmem:[#allocation5 + $0x230] sm:$0xff]
    %v286 = vld [vmem:[#allocation5 + $0x238] sm:$0xff]
    %v287 = vld [vmem:[#allocation5 + $0x240] sm:$0xff]
    %v288 = vld [vmem:[#allocation5 + $0x248] sm:$0xff]
    %v289 = vld [vmem:[#allocation5 + $0x250] sm:$0xff]
    %v290 = vld [vmem:[#allocation5 + $0x258] sm:$0xff]
    %v291 = vld [vmem:[#allocation5 + $0x260] sm:$0xff]
    %v292 = vld [vmem:[#allocation5 + $0x268] sm:$0xff]
    %v293 = vld [vmem:[#allocation5 + $0x270] sm:$0xff]
    %v294 = vld [vmem:[#allocation5 + $0x278] sm:$0xff]
    %v295 = vld [vmem:[#allocation5 + $0x280] sm:$0xff]
    %v296 = vld [vmem:[#allocation5 + $0x288] sm:$0xff]
    %v297 = vld [vmem:[#allocation5 + $0x290] sm:$0xff]
    %v298 = vld [vmem:[#allocation5 + $0x298] sm:$0xff]
    %v299 = vld [vmem:[#allocation5 + $0x2a0] sm:$0xff]
    %v300 = vld [vmem:[#allocation5 + $0x2a8] sm:$0xff]
    %v301 = vld [vmem:[#allocation5 + $0x2b0] sm:$0xff]
    %v302 = vld [vmem:[#allocation5 + $0x2b8] sm:$0xff]
    %v303 = vld [vmem:[#allocation5 + $0x2c0] sm:$0xff]
    %v304 = vld [vmem:[#allocation5 + $0x2c8] sm:$0xff]
    %v305 = vld [vmem:[#allocation5 + $0x2d0] sm:$0xff]
    %v306 = vld [vmem:[#allocation5 + $0x2d8] sm:$0xff]
    %v307 = vld [vmem:[#allocation5 + $0x2e0] sm:$0xff]
    %v308 = vld [vmem:[#allocation5 + $0x2e8] sm:$0xff]
    %v309 = vld [vmem:[#allocation5 + $0x2f0] sm:$0xff]
    %v310 = vld [vmem:[#allocation5 + $0x2f8] sm:$0xff]
    %v407 = vunpack.c.l.b16 %v215
    %v408 = vunpack.c.h.b16 %v215
    %v409 = vunpack.c.l.b16 %v216
    %v410 = vunpack.c.h.b16 %v216
    %v411 = vunpack.c.l.b16 %v217
    %v412 = vunpack.c.h.b16 %v217
    %v413 = vunpack.c.l.b16 %v218
    %v414 = vunpack.c.h.b16 %v218
    %v415 = vunpack.c.l.b16 %v219
    %v416 = vunpack.c.h.b16 %v219
    %v417 = vunpack.c.l.b16 %v220
    %v418 = vunpack.c.h.b16 %v220
    %v419 = vunpack.c.l.b16 %v221
    %v420 = vunpack.c.h.b16 %v221
    %v421 = vunpack.c.l.b16 %v222
    %v422 = vunpack.c.h.b16 %v222
    %v423 = vunpack.c.l.b16 %v223
    %v424 = vunpack.c.h.b16 %v223
    %v425 = vunpack.c.l.b16 %v224
    %v426 = vunpack.c.h.b16 %v224
    %v427 = vunpack.c.l.b16 %v225
    %v428 = vunpack.c.h.b16 %v225
    %v429 = vunpack.c.l.b16 %v226
    %v430 = vunpack.c.h.b16 %v226
    %v431 = vunpack.c.l.b16 %v227
    %v432 = vunpack.c.h.b16 %v227
    %v433 = vunpack.c.l.b16 %v228
    %v434 = vunpack.c.h.b16 %v228
    %v435 = vunpack.c.l.b16 %v229
    %v436 = vunpack.c.h.b16 %v229
    %v437 = vunpack.c.l.b16 %v230
    %v438 = vunpack.c.h.b16 %v230
    %v439 = vunpack.c.l.b16 %v231
    %v440 = vunpack.c.h.b16 %v231
    %v441 = vunpack.c.l.b16 %v232
    %v442 = vunpack.c.h.b16 %v232
    %v443 = vunpack.c.l.b16 %v233
    %v444 = vunpack.c.h.b16 %v233
    %v445 = vunpack.c.l.b16 %v234
    %v446 = vunpack.c.h.b16 %v234
    %v447 = vunpack.c.l.b16 %v235
    %v448 = vunpack.c.h.b16 %v235
    %v449 = vunpack.c.l.b16 %v236
    %v450 = vunpack.c.h.b16 %v236
    %v451 = vunpack.c.l.b16 %v237
    %v452 = vunpack.c.h.b16 %v237
    %v453 = vunpack.c.l.b16 %v238
    %v454 = vunpack.c.h.b16 %v238
    %v455 = vunpack.c.l.b16 %v239
    %v456 = vunpack.c.h.b16 %v239
    %v457 = vunpack.c.l.b16 %v240
    %v458 = vunpack.c.h.b16 %v240
    %v459 = vunpack.c.l.b16 %v241
    %v460 = vunpack.c.h.b16 %v241
    %v461 = vunpack.c.l.b16 %v242
    %v462 = vunpack.c.h.b16 %v242
    %v463 = vunpack.c.l.b16 %v243
    %v464 = vunpack.c.h.b16 %v243
    %v465 = vunpack.c.l.b16 %v244
    %v466 = vunpack.c.h.b16 %v244
    %v467 = vunpack.c.l.b16 %v245
    %v468 = vunpack.c.h.b16 %v245
    %v469 = vunpack.c.l.b16 %v246
    %v470 = vunpack.c.h.b16 %v246
    %v471 = vunpack.c.l.b16 %v247
    %v472 = vunpack.c.h.b16 %v247
    %v473 = vunpack.c.l.b16 %v248
    %v474 = vunpack.c.h.b16 %v248
    %v475 = vunpack.c.l.b16 %v249
    %v476 = vunpack.c.h.b16 %v249
    %v477 = vunpack.c.l.b16 %v250
    %v478 = vunpack.c.h.b16 %v250
    %v479 = vunpack.c.l.b16 %v251
    %v480 = vunpack.c.h.b16 %v251
    %v481 = vunpack.c.l.b16 %v252
    %v482 = vunpack.c.h.b16 %v252
    %v483 = vunpack.c.l.b16 %v253
    %v484 = vunpack.c.h.b16 %v253
    %v485 = vunpack.c.l.b16 %v254
    %v486 = vunpack.c.h.b16 %v254
    %v487 = vunpack.c.l.b16 %v255
    %v488 = vunpack.c.h.b16 %v255
    %v489 = vunpack.c.l.b16 %v256
    %v490 = vunpack.c.h.b16 %v256
    %v491 = vunpack.c.l.b16 %v257
    %v492 = vunpack.c.h.b16 %v257
    %v493 = vunpack.c.l.b16 %v258
    %v494 = vunpack.c.h.b16 %v258
    %v495 = vunpack.c.l.b16 %v259
    %v496 = vunpack.c.h.b16 %v259
    %v497 = vunpack.c.l.b16 %v260
    %v498 = vunpack.c.h.b16 %v260
    %v499 = vunpack.c.l.b16 %v261
    %v500 = vunpack.c.h.b16 %v261
    %v501 = vunpack.c.l.b16 %v262
    %v502 = vunpack.c.h.b16 %v262
    %v503 = vunpack.c.l.b16 %v263
    %v504 = vunpack.c.h.b16 %v263
    %v505 = vunpack.c.l.b16 %v264
    %v506 = vunpack.c.h.b16 %v264
    %v507 = vunpack.c.l.b16 %v265
    %v508 = vunpack.c.h.b16 %v265
    %v509 = vunpack.c.l.b16 %v266
    %v510 = vunpack.c.h.b16 %v266
    %v511 = vunpack.c.l.b16 %v267
    %v512 = vunpack.c.h.b16 %v267
    %v513 = vunpack.c.l.b16 %v268
    %v514 = vunpack.c.h.b16 %v268
    %v515 = vunpack.c.l.b16 %v269
    %v516 = vunpack.c.h.b16 %v269
    %v517 = vunpack.c.l.b16 %v270
    %v518 = vunpack.c.h.b16 %v270
    %v519 = vunpack.c.l.b16 %v271
    %v520 = vunpack.c.h.b16 %v271
    %v521 = vunpack.c.l.b16 %v272
    %v522 = vunpack.c.h.b16 %v272
    %v523 = vunpack.c.l.b16 %v273
    %v524 = vunpack.c.h.b16 %v273
    %v525 = vunpack.c.l.b16 %v274
    %v526 = vunpack.c.h.b16 %v274
    %v527 = vunpack.c.l.b16 %v275
    %v528 = vunpack.c.h.b16 %v275
    %v529 = vunpack.c.l.b16 %v276
    %v530 = vunpack.c.h.b16 %v276
    %v531 = vunpack.c.l.b16 %v277
    %v532 = vunpack.c.h.b16 %v277
    %v533 = vunpack.c.l.b16 %v278
    %v534 = vunpack.c.h.b16 %v278
    %v535 = vunpack.c.l.b16 %v279
    %v536 = vunpack.c.h.b16 %v279
    %v537 = vunpack.c.l.b16 %v280
    %v538 = vunpack.c.h.b16 %v280
    %v539 = vunpack.c.l.b16 %v281
    %v540 = vunpack.c.h.b16 %v281
    %v541 = vunpack.c.l.b16 %v282
    %v542 = vunpack.c.h.b16 %v282
    %v543 = vunpack.c.l.b16 %v283
    %v544 = vunpack.c.h.b16 %v283
    %v545 = vunpack.c.l.b16 %v284
    %v546 = vunpack.c.h.b16 %v284
    %v547 = vunpack.c.l.b16 %v285
    %v548 = vunpack.c.h.b16 %v285
    %v549 = vunpack.c.l.b16 %v286
    %v550 = vunpack.c.h.b16 %v286
    %v551 = vunpack.c.l.b16 %v287
    %v552 = vunpack.c.h.b16 %v287
    %v553 = vunpack.c.l.b16 %v288
    %v554 = vunpack.c.h.b16 %v288
    %v555 = vunpack.c.l.b16 %v289
    %v556 = vunpack.c.h.b16 %v289
    %v557 = vunpack.c.l.b16 %v290
    %v558 = vunpack.c.h.b16 %v290
    %v559 = vunpack.c.l.b16 %v291
    %v560 = vunpack.c.h.b16 %v291
    %v561 = vunpack.c.l.b16 %v292
    %v562 = vunpack.c.h.b16 %v292
    %v563 = vunpack.c.l.b16 %v293
    %v564 = vunpack.c.h.b16 %v293
    %v565 = vunpack.c.l.b16 %v294
    %v566 = vunpack.c.h.b16 %v294
    %v567 = vunpack.c.l.b16 %v295
    %v568 = vunpack.c.h.b16 %v295
    %v569 = vunpack.c.l.b16 %v296
    %v570 = vunpack.c.h.b16 %v296
    %v571 = vunpack.c.l.b16 %v297
    %v572 = vunpack.c.h.b16 %v297
    %v573 = vunpack.c.l.b16 %v298
    %v574 = vunpack.c.h.b16 %v298
    %v575 = vunpack.c.l.b16 %v299
    %v576 = vunpack.c.h.b16 %v299
    %v577 = vunpack.c.l.b16 %v300
    %v578 = vunpack.c.h.b16 %v300
    %v579 = vunpack.c.l.b16 %v301
    %v580 = vunpack.c.h.b16 %v301
    %v581 = vunpack.c.l.b16 %v302
    %v582 = vunpack.c.h.b16 %v302
    %v583 = vunpack.c.l.b16 %v303
    %v584 = vunpack.c.h.b16 %v303
    %v585 = vunpack.c.l.b16 %v304
    %v586 = vunpack.c.h.b16 %v304
    %v587 = vunpack.c.l.b16 %v305
    %v588 = vunpack.c.h.b16 %v305
    %v589 = vunpack.c.l.b16 %v306
    %v590 = vunpack.c.h.b16 %v306
    %v591 = vunpack.c.l.b16 %v307
    %v592 = vunpack.c.h.b16 %v307
    %v593 = vunpack.c.l.b16 %v308
    %v594 = vunpack.c.h.b16 %v308
    %v595 = vunpack.c.l.b16 %v309
    %v596 = vunpack.c.h.b16 %v309
    %v597 = vunpack.c.l.b16 %v310
    %v598 = vunpack.c.h.b16 %v310
    %v599 = vpack.c.b16 %v409, %v407
    %v600 = vpack.c.b16 %v410, %v408
    %v601 = vpack.c.b16 %v413, %v411
    %v602 = vpack.c.b16 %v414, %v412
    %v603 = vpack.c.b16 %v417, %v415
    %v604 = vpack.c.b16 %v418, %v416
    %v605 = vpack.c.b16 %v421, %v419
    %v606 = vpack.c.b16 %v422, %v420
    %v607 = vpack.c.b16 %v425, %v423
    %v608 = vpack.c.b16 %v426, %v424
    %v609 = vpack.c.b16 %v429, %v427
    %v610 = vpack.c.b16 %v430, %v428
    %v611 = vpack.c.b16 %v433, %v431
    %v612 = vpack.c.b16 %v434, %v432
    %v613 = vpack.c.b16 %v437, %v435
    %v614 = vpack.c.b16 %v438, %v436
    %v615 = vpack.c.b16 %v441, %v439
    %v616 = vpack.c.b16 %v442, %v440
    %v617 = vpack.c.b16 %v445, %v443
    %v618 = vpack.c.b16 %v446, %v444
    %v619 = vpack.c.b16 %v449, %v447
    %v620 = vpack.c.b16 %v450, %v448
    %v621 = vpack.c.b16 %v453, %v451
    %v622 = vpack.c.b16 %v454, %v452
    %v623 = vpack.c.b16 %v457, %v455
    %v624 = vpack.c.b16 %v458, %v456
    %v625 = vpack.c.b16 %v461, %v459
    %v626 = vpack.c.b16 %v462, %v460
    %v627 = vpack.c.b16 %v465, %v463
    %v628 = vpack.c.b16 %v466, %v464
    %v629 = vpack.c.b16 %v469, %v467
    %v630 = vpack.c.b16 %v470, %v468
    %v631 = vpack.c.b16 %v473, %v471
    %v632 = vpack.c.b16 %v474, %v472
    %v633 = vpack.c.b16 %v477, %v475
    %v634 = vpack.c.b16 %v478, %v476
    %v635 = vpack.c.b16 %v481, %v479
    %v636 = vpack.c.b16 %v482, %v480
    %v637 = vpack.c.b16 %v485, %v483
    %v638 = vpack.c.b16 %v486, %v484
    %v639 = vpack.c.b16 %v489, %v487
    %v640 = vpack.c.b16 %v490, %v488
    %v641 = vpack.c.b16 %v493, %v491
    %v642 = vpack.c.b16 %v494, %v492
    %v643 = vpack.c.b16 %v497, %v495
    %v644 = vpack.c.b16 %v498, %v496
    %v645 = vpack.c.b16 %v501, %v499
    %v646 = vpack.c.b16 %v502, %v500
    %v647 = vpack.c.b16 %v505, %v503
    %v648 = vpack.c.b16 %v506, %v504
    %v649 = vpack.c.b16 %v509, %v507
    %v650 = vpack.c.b16 %v510, %v508
    %v651 = vpack.c.b16 %v513, %v511
    %v652 = vpack.c.b16 %v514, %v512
    %v653 = vpack.c.b16 %v517, %v515
    %v654 = vpack.c.b16 %v518, %v516
    %v655 = vpack.c.b16 %v521, %v519
    %v656 = vpack.c.b16 %v522, %v520
    %v657 = vpack.c.b16 %v525, %v523
    %v658 = vpack.c.b16 %v526, %v524
    %v659 = vpack.c.b16 %v529, %v527
    %v660 = vpack.c.b16 %v530, %v528
    %v661 = vpack.c.b16 %v533, %v531
    %v662 = vpack.c.b16 %v534, %v532
    %v663 = vpack.c.b16 %v537, %v535
    %v664 = vpack.c.b16 %v538, %v536
    %v665 = vpack.c.b16 %v541, %v539
    %v666 = vpack.c.b16 %v542, %v540
    %v667 = vpack.c.b16 %v545, %v543
    %v668 = vpack.c.b16 %v546, %v544
    %v669 = vpack.c.b16 %v549, %v547
    %v670 = vpack.c.b16 %v550, %v548
    %v671 = vpack.c.b16 %v553, %v551
    %v672 = vpack.c.b16 %v554, %v552
    %v673 = vpack.c.b16 %v557, %v555
    %v674 = vpack.c.b16 %v558, %v556
    %v675 = vpack.c.b16 %v561, %v559
    %v676 = vpack.c.b16 %v562, %v560
    %v677 = vpack.c.b16 %v565, %v563
    %v678 = vpack.c.b16 %v566, %v564
    %v679 = vpack.c.b16 %v569, %v567
    %v680 = vpack.c.b16 %v570, %v568
    %v681 = vpack.c.b16 %v573, %v571
    %v682 = vpack.c.b16 %v574, %v572
    %v683 = vpack.c.b16 %v577, %v575
    %v684 = vpack.c.b16 %v578, %v576
    %v685 = vpack.c.b16 %v581, %v579
    %v686 = vpack.c.b16 %v582, %v580
    %v687 = vpack.c.b16 %v585, %v583
    %v688 = vpack.c.b16 %v586, %v584
    %v689 = vpack.c.b16 %v589, %v587
    %v690 = vpack.c.b16 %v590, %v588
    %v691 = vpack.c.b16 %v593, %v591
    %v692 = vpack.c.b16 %v594, %v592
    %v693 = vpack.c.b16 %v597, %v595
    %v694 = vpack.c.b16 %v598, %v596
    %791 = vmatprep.subr.bf16.mxu0 %v600
    %792 = vmatpush1.bf16.msra.mxu0 %v599
    %793 = vmatprep.subr.bf16.mxu0 %v602
    %794 = vmatpush1.bf16.msra.mxu0 %v601
    %795 = vmatprep.subr.bf16.mxu0 %v604
    %796 = vmatpush1.bf16.msra.mxu0 %v603
    %797 = vmatprep.subr.bf16.mxu0 %v606
    %798 = vmatpush1.bf16.msra.mxu0 %v605
    %799 = vmatprep.subr.bf16.mxu0 %v608
    %800 = vmatpush1.bf16.msra.mxu0 %v607
    %801 = vmatprep.subr.bf16.mxu0 %v610
    %802 = vmatpush1.bf16.msra.mxu0 %v609
    %803 = vmatprep.subr.bf16.mxu0 %v612
    %804 = vmatpush1.bf16.msra.mxu0 %v611
    %805 = vmatprep.subr.bf16.mxu0 %v614
    %806 = vmatpush1.bf16.msra.mxu0 %v613
    %807 = vmatprep.subr.bf16.mxu0 %v616
    %808 = vmatpush1.bf16.msra.mxu0 %v615
    %809 = vmatprep.subr.bf16.mxu0 %v618
    %810 = vmatpush1.bf16.msra.mxu0 %v617
    %811 = vmatprep.subr.bf16.mxu0 %v620
    %812 = vmatpush1.bf16.msra.mxu0 %v619
    %813 = vmatprep.subr.bf16.mxu0 %v622
    %814 = vmatpush1.bf16.msra.mxu0 %v621
    %815 = vmatprep.subr.bf16.mxu0 %v624
    %816 = vmatpush1.bf16.msra.mxu0 %v623
    %817 = vmatprep.subr.bf16.mxu0 %v626
    %818 = vmatpush1.bf16.msra.mxu0 %v625
    %819 = vmatprep.subr.bf16.mxu0 %v628
    %820 = vmatpush1.bf16.msra.mxu0 %v627
    %821 = vmatprep.subr.bf16.mxu0 %v630
    %822 = vmatpush1.bf16.msra.mxu0 %v629
    %823 = vmatprep.mubr.bf16.mxu0 %v204
    %824 = vmatmul.mubr.bf16.gmra.mrb[0].mxu0 %v203
    %v825 = vpop.f32.mrb[0].mxu0
    %v826 = vadd.f32 0.0, %v825
    %v827 = vpop.f32.mrb[0].mxu0
    %v828 = vadd.f32 0.0, %v827
    %v829 = vpop.f32.mrb[0].mxu0
    %v830 = vadd.f32 0.0, %v829
    %v831 = vpop.f32.mrb[0].mxu0
    %v832 = vadd.f32 0.0, %v831
    %833 = vmatprep.mubr.bf16.mxu0 %v210
    %834 = vmatmul.mubr.bf16.gmra.mrb[0].mxu0 %v209
    %v835 = vpop.f32.mrb[0].mxu0
    %v836 = vadd.f32 0.0, %v835
    %v837 = vpop.f32.mrb[0].mxu0
    %v838 = vadd.f32 0.0, %v837
    %v839 = vpop.f32.mrb[0].mxu0
    %v840 = vadd.f32 0.0, %v839
    %v841 = vpop.f32.mrb[0].mxu0
    %v842 = vadd.f32 0.0, %v841
    %843 = vdwg.mxu0
    %844 = vmatprep.subr.bf16.mxu0 %v632
    %845 = vmatpush1.bf16.msra.mxu0 %v631
    %846 = vmatprep.subr.bf16.mxu0 %v634
    %847 = vmatpush1.bf16.msra.mxu0 %v633
    %848 = vmatprep.subr.bf16.mxu0 %v636
    %849 = vmatpush1.bf16.msra.mxu0 %v635
    %850 = vmatprep.subr.bf16.mxu0 %v638
    %851 = vmatpush1.bf16.msra.mxu0 %v637
    %852 = vmatprep.subr.bf16.mxu0 %v640
    %853 = vmatpush1.bf16.msra.mxu0 %v639
    %854 = vmatprep.subr.bf16.mxu0 %v642
    %855 = vmatpush1.bf16.msra.mxu0 %v641
    %856 = vmatprep.subr.bf16.mxu0 %v644
    %857 = vmatpush1.bf16.msra.mxu0 %v643
    %858 = vmatprep.subr.bf16.mxu0 %v646
    %859 = vmatpush1.bf16.msra.mxu0 %v645
    %860 = vmatprep.subr.bf16.mxu0 %v648
    %861 = vmatpush1.bf16.msra.mxu0 %v647
    %862 = vmatprep.subr.bf16.mxu0 %v650
    %863 = vmatpush1.bf16.msra.mxu0 %v649
    %864 = vmatprep.subr.bf16.mxu0 %v652
    %865 = vmatpush1.bf16.msra.mxu0 %v651
    %866 = vmatprep.subr.bf16.mxu0 %v654
    %867 = vmatpush1.bf16.msra.mxu0 %v653
    %868 = vmatprep.subr.bf16.mxu0 %v656
    %869 = vmatpush1.bf16.msra.mxu0 %v655
    %870 = vmatprep.subr.bf16.mxu0 %v658
    %871 = vmatpush1.bf16.msra.mxu0 %v657
    %872 = vmatprep.subr.bf16.mxu0 %v660
    %873 = vmatpush1.bf16.msra.mxu0 %v659
    %874 = vmatprep.subr.bf16.mxu0 %v662
    %875 = vmatpush1.bf16.msra.mxu0 %v661
    %876 = vmatprep.mubr.bf16.mxu0 %v206
    %877 = vmatmul.mubr.bf16.gmra.mrb[0].mxu0 %v205
    %v878 = vpop.f32.mrb[0].mxu0
    %v879 = vadd.f32 %v826, %v878
    %v880 = vpop.f32.mrb[0].mxu0
    %v881 = vadd.f32 %v828, %v880
    %v882 = vpop.f32.mrb[0].mxu0
    %v883 = vadd.f32 %v830, %v882
    %v884 = vpop.f32.mrb[0].mxu0
    %v885 = vadd.f32 %v832, %v884
    %886 = vmatprep.mubr.bf16.mxu0 %v212
    %887 = vmatmul.mubr.bf16.gmra.mrb[0].mxu0 %v211
    %v888 = vpop.f32.mrb[0].mxu0
    %v889 = vadd.f32 %v836, %v888
    %v890 = vpop.f32.mrb[0].mxu0
    %v891 = vadd.f32 %v838, %v890
    %v892 = vpop.f32.mrb[0].mxu0
    %v893 = vadd.f32 %v840, %v892
    %v894 = vpop.f32.mrb[0].mxu0
    %v895 = vadd.f32 %v842, %v894
    %896 = vdwg.mxu0
    %897 = vmatprep.subr.bf16.mxu0 %v664
    %898 = vmatpush1.bf16.msra.mxu0 %v663
    %899 = vmatprep.subr.bf16.mxu0 %v666
    %900 = vmatpush1.bf16.msra.mxu0 %v665
    %901 = vmatprep.subr.bf16.mxu0 %v668
    %902 = vmatpush1.bf16.msra.mxu0 %v667
    %903 = vmatprep.subr.bf16.mxu0 %v670
    %904 = vmatpush1.bf16.msra.mxu0 %v669
    %905 = vmatprep.subr.bf16.mxu0 %v672
    %906 = vmatpush1.bf16.msra.mxu0 %v671
    %907 = vmatprep.subr.bf16.mxu0 %v674
    %908 = vmatpush1.bf16.msra.mxu0 %v673
    %909 = vmatprep.subr.bf16.mxu0 %v676
    %910 = vmatpush1.bf16.msra.mxu0 %v675
    %911 = vmatprep.subr.bf16.mxu0 %v678
    %912 = vmatpush1.bf16.msra.mxu0 %v677
    %913 = vmatprep.subr.bf16.mxu0 %v680
    %914 = vmatpush1.bf16.msra.mxu0 %v679
    %915 = vmatprep.subr.bf16.mxu0 %v682
    %916 = vmatpush1.bf16.msra.mxu0 %v681
    %917 = vmatprep.subr.bf16.mxu0 %v684
    %918 = vmatpush1.bf16.msra.mxu0 %v683
    %919 = vmatprep.subr.bf16.mxu0 %v686
    %920 = vmatpush1.bf16.msra.mxu0 %v685
    %921 = vmatprep.subr.bf16.mxu0 %v688
    %922 = vmatpush1.bf16.msra.mxu0 %v687
    %923 = vmatprep.subr.bf16.mxu0 %v690
    %924 = vmatpush1.bf16.msra.mxu0 %v689
    %925 = vmatprep.subr.bf16.mxu0 %v692
    %926 = vmatpush1.bf16.msra.mxu0 %v691
    %927 = vmatprep.subr.bf16.mxu0 %v694
    %928 = vmatpush1.bf16.msra.mxu0 %v693
    %929 = vmatprep.mubr.bf16.mxu0 %v208
    %930 = vmatmul.mubr.bf16.gmra.mrb[0].mxu0 %v207
    %v931 = vpop.f32.mrb[0].mxu0
    %v932 = vadd.f32 %v879, %v931
    %v933 = vpop.f32.mrb[0].mxu0
    %v934 = vadd.f32 %v881, %v933
    %v935 = vpop.f32.mrb[0].mxu0
    %v936 = vadd.f32 %v883, %v935
    %v937 = vpop.f32.mrb[0].mxu0
    %v938 = vadd.f32 %v885, %v937
    %939 = vmatprep.mubr.bf16.mxu0 %v214
    %940 = vmatmul.mubr.bf16.gmra.mrb[0].mxu0 %v213
    %v941 = vpop.f32.mrb[0].mxu0
    %v942 = vadd.f32 %v889, %v941
    %v943 = vpop.f32.mrb[0].mxu0
    %v944 = vadd.f32 %v891, %v943
    %v945 = vpop.f32.mrb[0].mxu0
    %v946 = vadd.f32 %v893, %v945
    %v947 = vpop.f32.mrb[0].mxu0
    %v948 = vadd.f32 %v895, %v947
    %949 = vdwg.mxu0
    %v950 = vadd.f32 %v932, %v936
    %v951 = vadd.f32 %v950, %v942
    %v952 = vadd.f32 %v951, %v946
    %v953 = vrot.slane %v952, 4
    %v954 = vadd.f32 %v952, %v953
    %v955 = vrot.slane %v954, 2
    %v956 = vadd.f32 %v954, %v955
    %v957 = vrot.slane %v956, 1
    %v958 = vadd.f32 %v956, %v957
    %v959 = vadd.f32 %v934, %v938
    %v960 = vadd.f32 %v959, %v944
    %v961 = vadd.f32 %v960, %v948
    %v962 = vrot.slane %v961, 4
    %v963 = vadd.f32 %v961, %v962
    %v964 = vrot.slane %v963, 2
    %v965 = vadd.f32 %v963, %v964
    %v966 = vrot.slane %v965, 1
    %v967 = vadd.f32 %v965, %v966
    %v968 = vmul.f32 %v932, %v932
    %v969 = vmul.f32 %v934, %v934
    %v970 = vmul.f32 %v936, %v936
    %v971 = vmul.f32 %v938, %v938
    %v972 = vmul.f32 %v942, %v942
    %v973 = vmul.f32 %v944, %v944
    %v974 = vmul.f32 %v946, %v946
    %v975 = vmul.f32 %v948, %v948
    %v976 = vadd.f32 %v968, %v970
    %v977 = vadd.f32 %v976, %v972
    %v978 = vadd.f32 %v977, %v974
    %v979 = vrot.slane %v978, 4
    %v980 = vadd.f32 %v978, %v979
    %v981 = vrot.slane %v980, 2
    %v982 = vadd.f32 %v980, %v981
    %v983 = vrot.slane %v982, 1
    %v984 = vadd.f32 %v982, %v983
    %v985 = vadd.f32 %v969, %v971
    %v986 = vadd.f32 %v985, %v973
    %v987 = vadd.f32 %v986, %v975
    %v988 = vrot.slane %v987, 4
    %v989 = vadd.f32 %v987, %v988
    %v990 = vrot.slane %v989, 2
    %v991 = vadd.f32 %v989, %v990
    %v992 = vrot.slane %v991, 1
    %v993 = vadd.f32 %v991, %v992
    %vm994 = vcmask 1040384
    %v995 = vsel %vm994, %v958, %v984
    %v996 = vsel %vm994, %v967, %v993
    %997 = vrot.lane.b32.xlu0 %v995, 16
    %v998 = vpop.permute.xlu0 %997
    %999 = vrot.lane.b32.xlu0 %v996, 16
    %v1000 = vpop.permute.xlu0 %999
    %v1001 = vlaneseq
    %v1002 = vand.u32 %v1001, 127
    %vm1003 = vcmp.lt.s32.totalorder %v1002, 16
    %v1004 = vsel %vm1003, %v998, %v1000
    %v1005 = vsel %vm1003, %v1000, %v998
    %v1006 = vadd.f32 %v995, %v1005
    %v1007 = vadd.f32 %v996, %v1004
    %1008 = vrot.lane.b32.xlu0 %v1006, 32
    %v1009 = vpop.permute.xlu0 %1008
    %1010 = vrot.lane.b32.xlu0 %v1007, 32
    %v1011 = vpop.permute.xlu0 %1010
    %vm1012 = vcmp.lt.s32.totalorder %v1002, 32
    %v1013 = vsel %vm1012, %v1009, %v1011
    %v1014 = vsel %vm1012, %v1011, %v1009
    %v1015 = vadd.f32 %v1006, %v1014
    %v1016 = vadd.f32 %v1007, %v1013
    %1017 = vrot.lane.b32.xlu0 %v1015, 64
    %v1018 = vpop.permute.xlu0 %1017
    %1019 = vrot.lane.b32.xlu0 %v1016, 64
    %v1020 = vpop.permute.xlu0 %1019
    %vm1021 = vcmp.lt.s32.totalorder %v1002, 64
    %v1022 = vsel %vm1021, %v1018, %v1020
    %v1023 = vsel %vm1021, %v1020, %v1018
    %v1024 = vadd.f32 %v1015, %v1023
    %v1025 = vadd.f32 %v1016, %v1022
    %v1026 = vadd.f32 %v1024, %v1025
    %v1027 = vmul.f32 %v1026, 0.001953125
    %v1028 = vmul.f32 %v1027, %v1027
    %v1030 = vrot.slane %v1028, 7
    %v1032 = vsub.f32 %v1027, %v1030
    %v1033 = vld [vmem:[%s3] sm:$0x3]
    %v1034 = vadd.f32 %v1032, 1e-05
    %v1035 = vrsqrt.pop %v1034
    %v1037 = vcombine.low %v1035, %v1035
    %v1039 = vunpack.c.l.s4 1966171168
    %v1040 = vunpack.c.0.s8 %v1039
    %v1041 = vlaneseq
    %v1042 = vshrl.u32 %v1041, 7
    %v1043 = vsub.s32 %v1040, %v1042
    %v1044 = vrot.slane %v1037, %v1043
    %v1045 = vcombine.high %v1044, %v1044
    %v1047 = vunpack.c.l.s4 1966171168
    %v1048 = vunpack.c.0.s8 %v1047
    %v1049 = vlaneseq
    %v1050 = vshrl.u32 %v1049, 7
    %v1051 = vsub.s32 %v1048, %v1050
    %v1052 = vrot.slane %v1045, %v1051
    %v1054 = vmul.f32 %v1033, %v1052
    %v1055 = vld [vmem:[%s4] sm:$0x3]
    %v1057 = vlaneseq
    %v1058 = vshrl.u32 %v1057, 7
    %v1059 = vsub.s32 0, %v1058
    %v1060 = vrot.slane %v1054, %v1059
    %v1061 = vlaneseq
    %v1062 = vshrl.u32 %v1061, 7
    %v1063 = vsub.s32 1, %v1062
    %v1064 = vrot.slane %v1054, %v1063
    %v1067 = vmul.f32 %v1027, %v1060
    %v1068 = vmul.f32 %v1027, %v1064
    %v1071 = vcombine.low %v1067, %v1068
    %v1073 = vunpack.c.l.s4 1966171168
    %v1074 = vunpack.c.0.s8 %v1073
    %v1075 = vlaneseq
    %v1076 = vshrl.u32 %v1075, 7
    %v1077 = vsub.s32 %v1074, %v1076
    %v1078 = vrot.slane %v1071, %v1077
    %v1080 = vunpack.c.l.s4 1966171168
    %v1081 = vunpack.c.0.s8 %v1080
    %v1082 = vlaneseq
    %v1083 = vshrl.u32 %v1082, 7
    %v1084 = vsub.s32 %v1081, %v1083
    %v1085 = vrot.slane %v1078, %v1084
    %v1087 = vsub.f32 %v1055, %v1085
    %v1088 = vmul.f32 %v932, %v1060
    %v1089 = vmul.f32 %v934, %v1064
    %v1090 = vmul.f32 %v936, %v1060
    %v1091 = vmul.f32 %v938, %v1064
    %v1092 = vmul.f32 %v942, %v1060
    %v1093 = vmul.f32 %v944, %v1064
    %v1094 = vmul.f32 %v946, %v1060
    %v1095 = vmul.f32 %v948, %v1064
    %v1097 = vlaneseq
    %v1098 = vshrl.u32 %v1097, 7
    %v1099 = vsub.s32 0, %v1098
    %v1100 = vrot.slane %v1087, %v1099
    %v1101 = vlaneseq
    %v1102 = vshrl.u32 %v1101, 7
    %v1103 = vsub.s32 1, %v1102
    %v1104 = vrot.slane %v1087, %v1103
    %v1107 = vadd.f32 %v1088, %v1100
    %v1108 = vadd.f32 %v1089, %v1104
    %v1109 = vadd.f32 %v1090, %v1100
    %v1110 = vadd.f32 %v1091, %v1104
    %v1111 = vadd.f32 %v1092, %v1100
    %v1112 = vadd.f32 %v1093, %v1104
    %v1113 = vadd.f32 %v1094, %v1100
    %v1114 = vadd.f32 %v1095, %v1104
    %v1115 = vmax.f32 %v1107, 0.0
    %v1116 = vmax.f32 %v1108, 0.0
    %v1117 = vmax.f32 %v1109, 0.0
    %v1118 = vmax.f32 %v1110, 0.0
    %v1119 = vmax.f32 %v1111, 0.0
    %v1120 = vmax.f32 %v1112, 0.0
    %v1121 = vmax.f32 %v1113, 0.0
    %v1122 = vmax.f32 %v1114, 0.0
    %v1123 = vrot.slane %v1115, 7
    %v1124 = vrot.slane %v1116, 7
    %v1125 = vrot.slane %v1117, 7
    %v1126 = vrot.slane %v1118, 7
    %v1127 = vrot.slane %v1119, 7
    %v1128 = vrot.slane %v1120, 7
    %v1129 = vrot.slane %v1121, 7
    %v1130 = vrot.slane %v1122, 7
    %v1131 = vsel %vm161, %v1127, %v1129
    %v1132 = vsel %vm161, %v1128, %v1130
    %v1133 = vsel %vm161, %v1125, %v1127
    %v1134 = vsel %vm161, %v1126, %v1128
    %v1135 = vsel %vm161, %v1123, %v1125
    %v1136 = vsel %vm161, %v1124, %v1126
    %v1137 = vsel %vm161, %v1129, %v1123
    %v1138 = vsel %vm161, %v1130, %v1124
    %v1139 = vmul.f32 %v1137, %v129
    %v1140 = vmul.f32 %v1138, %v129
    %v1141 = vmul.f32 %v1135, %v130
    %v1142 = vmul.f32 %v1136, %v130
    %v1143 = vmul.f32 %v1133, %v131
    %v1144 = vmul.f32 %v1134, %v131
    %v1145 = vmul.f32 %v1131, %v132
    %v1146 = vmul.f32 %v1132, %v132
    %v1147 = vrot.slane %v1115, 1
    %v1148 = vrot.slane %v1116, 1
    %v1149 = vrot.slane %v1117, 1
    %v1150 = vrot.slane %v1118, 1
    %v1151 = vrot.slane %v1119, 1
    %v1152 = vrot.slane %v1120, 1
    %v1153 = vrot.slane %v1121, 1
    %v1154 = vrot.slane %v1122, 1
    %v1155 = vsel %vm186, %v1151, %v1153
    %v1156 = vsel %vm186, %v1152, %v1154
    %v1157 = vsel %vm186, %v1149, %v1151
    %v1158 = vsel %vm186, %v1150, %v1152
    %v1159 = vsel %vm186, %v1147, %v1149
    %v1160 = vsel %vm186, %v1148, %v1150
    %v1161 = vsel %vm186, %v1153, %v1147
    %v1162 = vsel %vm186, %v1154, %v1148
    %v1163 = vmul.f32 %v1159, %v141
    %v1164 = vmul.f32 %v1160, %v141
    %v1165 = vmul.f32 %v1157, %v142
    %v1166 = vmul.f32 %v1158, %v142
    %v1167 = vmul.f32 %v1155, %v143
    %v1168 = vmul.f32 %v1156, %v143
    %v1169 = vmul.f32 %v1161, %v144
    %v1170 = vmul.f32 %v1162, %v144
    %v1171 = vpack.c.bf16 %v1141, %v1139
    %v1172 = vpack.c.bf16 %v1142, %v1140
    %v1173 = vpack.c.bf16 %v1117, %v1115
    %v1174 = vpack.c.bf16 %v1118, %v1116
    %v1175 = vpack.c.bf16 %v1165, %v1163
    %v1176 = vpack.c.bf16 %v1166, %v1164
    %v1177 = vpack.c.bf16 %v1145, %v1143
    %v1178 = vpack.c.bf16 %v1146, %v1144
    %v1179 = vpack.c.bf16 %v1121, %v1119
    %v1180 = vpack.c.bf16 %v1122, %v1120
    %v1181 = vpack.c.bf16 %v1169, %v1167
    %v1182 = vpack.c.bf16 %v1170, %v1168
    %v1183 = vld [vmem:[#allocation7] sm:$0xff]
    %v1184 = vld [vmem:[#allocation7 + $0x8] sm:$0xff]
    %v1185 = vld [vmem:[#allocation7 + $0x10] sm:$0xff]
    %v1186 = vld [vmem:[#allocation7 + $0x18] sm:$0xff]
    %v1187 = vld [vmem:[#allocation7 + $0x20] sm:$0xff]
    %v1188 = vld [vmem:[#allocation7 + $0x28] sm:$0xff]
    %v1189 = vld [vmem:[#allocation7 + $0x30] sm:$0xff]
    %v1190 = vld [vmem:[#allocation7 + $0x38] sm:$0xff]
    %v1191 = vld [vmem:[#allocation7 + $0x40] sm:$0xff]
    %v1192 = vld [vmem:[#allocation7 + $0x48] sm:$0xff]
    %v1193 = vld [vmem:[#allocation7 + $0x50] sm:$0xff]
    %v1194 = vld [vmem:[#allocation7 + $0x58] sm:$0xff]
    %v1195 = vld [vmem:[#allocation7 + $0x60] sm:$0xff]
    %v1196 = vld [vmem:[#allocation7 + $0x68] sm:$0xff]
    %v1197 = vld [vmem:[#allocation7 + $0x70] sm:$0xff]
    %v1198 = vld [vmem:[#allocation7 + $0x78] sm:$0xff]
    %v1199 = vld [vmem:[#allocation7 + $0x80] sm:$0xff]
    %v1200 = vld [vmem:[#allocation7 + $0x88] sm:$0xff]
    %v1201 = vld [vmem:[#allocation7 + $0x90] sm:$0xff]
    %v1202 = vld [vmem:[#allocation7 + $0x98] sm:$0xff]
    %v1203 = vld [vmem:[#allocation7 + $0xa0] sm:$0xff]
    %v1204 = vld [vmem:[#allocation7 + $0xa8] sm:$0xff]
    %v1205 = vld [vmem:[#allocation7 + $0xb0] sm:$0xff]
    %v1206 = vld [vmem:[#allocation7 + $0xb8] sm:$0xff]
    %v1207 = vld [vmem:[#allocation7 + $0xc0] sm:$0xff]
    %v1208 = vld [vmem:[#allocation7 + $0xc8] sm:$0xff]
    %v1209 = vld [vmem:[#allocation7 + $0xd0] sm:$0xff]
    %v1210 = vld [vmem:[#allocation7 + $0xd8] sm:$0xff]
    %v1211 = vld [vmem:[#allocation7 + $0xe0] sm:$0xff]
    %v1212 = vld [vmem:[#allocation7 + $0xe8] sm:$0xff]
    %v1213 = vld [vmem:[#allocation7 + $0xf0] sm:$0xff]
    %v1214 = vld [vmem:[#allocation7 + $0xf8] sm:$0xff]
    %v1215 = vld [vmem:[#allocation7 + $0x100] sm:$0xff]
    %v1216 = vld [vmem:[#allocation7 + $0x108] sm:$0xff]
    %v1217 = vld [vmem:[#allocation7 + $0x110] sm:$0xff]
    %v1218 = vld [vmem:[#allocation7 + $0x118] sm:$0xff]
    %v1219 = vld [vmem:[#allocation7 + $0x120] sm:$0xff]
    %v1220 = vld [vmem:[#allocation7 + $0x128] sm:$0xff]
    %v1221 = vld [vmem:[#allocation7 + $0x130] sm:$0xff]
    %v1222 = vld [vmem:[#allocation7 + $0x138] sm:$0xff]
    %v1223 = vld [vmem:[#allocation7 + $0x140] sm:$0xff]
    %v1224 = vld [vmem:[#allocation7 + $0x148] sm:$0xff]
    %v1225 = vld [vmem:[#allocation7 + $0x150] sm:$0xff]
    %v1226 = vld [vmem:[#allocation7 + $0x158] sm:$0xff]
    %v1227 = vld [vmem:[#allocation7 + $0x160] sm:$0xff]
    %v1228 = vld [vmem:[#allocation7 + $0x168] sm:$0xff]
    %v1229 = vld [vmem:[#allocation7 + $0x170] sm:$0xff]
    %v1230 = vld [vmem:[#allocation7 + $0x178] sm:$0xff]
    %v1231 = vld [vmem:[#allocation7 + $0x180] sm:$0xff]
    %v1232 = vld [vmem:[#allocation7 + $0x188] sm:$0xff]
    %v1233 = vld [vmem:[#allocation7 + $0x190] sm:$0xff]
    %v1234 = vld [vmem:[#allocation7 + $0x198] sm:$0xff]
    %v1235 = vld [vmem:[#allocation7 + $0x1a0] sm:$0xff]
    %v1236 = vld [vmem:[#allocation7 + $0x1a8] sm:$0xff]
    %v1237 = vld [vmem:[#allocation7 + $0x1b0] sm:$0xff]
    %v1238 = vld [vmem:[#allocation7 + $0x1b8] sm:$0xff]
    %v1239 = vld [vmem:[#allocation7 + $0x1c0] sm:$0xff]
    %v1240 = vld [vmem:[#allocation7 + $0x1c8] sm:$0xff]
    %v1241 = vld [vmem:[#allocation7 + $0x1d0] sm:$0xff]
    %v1242 = vld [vmem:[#allocation7 + $0x1d8] sm:$0xff]
    %v1243 = vld [vmem:[#allocation7 + $0x1e0] sm:$0xff]
    %v1244 = vld [vmem:[#allocation7 + $0x1e8] sm:$0xff]
    %v1245 = vld [vmem:[#allocation7 + $0x1f0] sm:$0xff]
    %v1246 = vld [vmem:[#allocation7 + $0x1f8] sm:$0xff]
    %v1247 = vld [vmem:[#allocation7 + $0x200] sm:$0xff]
    %v1248 = vld [vmem:[#allocation7 + $0x208] sm:$0xff]
    %v1249 = vld [vmem:[#allocation7 + $0x210] sm:$0xff]
    %v1250 = vld [vmem:[#allocation7 + $0x218] sm:$0xff]
    %v1251 = vld [vmem:[#allocation7 + $0x220] sm:$0xff]
    %v1252 = vld [vmem:[#allocation7 + $0x228] sm:$0xff]
    %v1253 = vld [vmem:[#allocation7 + $0x230] sm:$0xff]
    %v1254 = vld [vmem:[#allocation7 + $0x238] sm:$0xff]
    %v1255 = vld [vmem:[#allocation7 + $0x240] sm:$0xff]
    %v1256 = vld [vmem:[#allocation7 + $0x248] sm:$0xff]
    %v1257 = vld [vmem:[#allocation7 + $0x250] sm:$0xff]
    %v1258 = vld [vmem:[#allocation7 + $0x258] sm:$0xff]
    %v1259 = vld [vmem:[#allocation7 + $0x260] sm:$0xff]
    %v1260 = vld [vmem:[#allocation7 + $0x268] sm:$0xff]
    %v1261 = vld [vmem:[#allocation7 + $0x270] sm:$0xff]
    %v1262 = vld [vmem:[#allocation7 + $0x278] sm:$0xff]
    %v1263 = vld [vmem:[#allocation7 + $0x280] sm:$0xff]
    %v1264 = vld [vmem:[#allocation7 + $0x288] sm:$0xff]
    %v1265 = vld [vmem:[#allocation7 + $0x290] sm:$0xff]
    %v1266 = vld [vmem:[#allocation7 + $0x298] sm:$0xff]
    %v1267 = vld [vmem:[#allocation7 + $0x2a0] sm:$0xff]
    %v1268 = vld [vmem:[#allocation7 + $0x2a8] sm:$0xff]
    %v1269 = vld [vmem:[#allocation7 + $0x2b0] sm:$0xff]
    %v1270 = vld [vmem:[#allocation7 + $0x2b8] sm:$0xff]
    %v1271 = vld [vmem:[#allocation7 + $0x2c0] sm:$0xff]
    %v1272 = vld [vmem:[#allocation7 + $0x2c8] sm:$0xff]
    %v1273 = vld [vmem:[#allocation7 + $0x2d0] sm:$0xff]
    %v1274 = vld [vmem:[#allocation7 + $0x2d8] sm:$0xff]
    %v1275 = vld [vmem:[#allocation7 + $0x2e0] sm:$0xff]
    %v1276 = vld [vmem:[#allocation7 + $0x2e8] sm:$0xff]
    %v1277 = vld [vmem:[#allocation7 + $0x2f0] sm:$0xff]
    %v1278 = vld [vmem:[#allocation7 + $0x2f8] sm:$0xff]
    %v1375 = vunpack.c.l.b16 %v1183
    %v1376 = vunpack.c.h.b16 %v1183
    %v1377 = vunpack.c.l.b16 %v1184
    %v1378 = vunpack.c.h.b16 %v1184
    %v1379 = vunpack.c.l.b16 %v1185
    %v1380 = vunpack.c.h.b16 %v1185
    %v1381 = vunpack.c.l.b16 %v1186
    %v1382 = vunpack.c.h.b16 %v1186
    %v1383 = vunpack.c.l.b16 %v1187
    %v1384 = vunpack.c.h.b16 %v1187
    %v1385 = vunpack.c.l.b16 %v1188
    %v1386 = vunpack.c.h.b16 %v1188
    %v1387 = vunpack.c.l.b16 %v1189
    %v1388 = vunpack.c.h.b16 %v1189
    %v1389 = vunpack.c.l.b16 %v1190
    %v1390 = vunpack.c.h.b16 %v1190
    %v1391 = vunpack.c.l.b16 %v1191
    %v1392 = vunpack.c.h.b16 %v1191
    %v1393 = vunpack.c.l.b16 %v1192
    %v1394 = vunpack.c.h.b16 %v1192
    %v1395 = vunpack.c.l.b16 %v1193
    %v1396 = vunpack.c.h.b16 %v1193
    %v1397 = vunpack.c.l.b16 %v1194
    %v1398 = vunpack.c.h.b16 %v1194
    %v1399 = vunpack.c.l.b16 %v1195
    %v1400 = vunpack.c.h.b16 %v1195
    %v1401 = vunpack.c.l.b16 %v1196
    %v1402 = vunpack.c.h.b16 %v1196
    %v1403 = vunpack.c.l.b16 %v1197
    %v1404 = vunpack.c.h.b16 %v1197
    %v1405 = vunpack.c.l.b16 %v1198
    %v1406 = vunpack.c.h.b16 %v1198
    %v1407 = vunpack.c.l.b16 %v1199
    %v1408 = vunpack.c.h.b16 %v1199
    %v1409 = vunpack.c.l.b16 %v1200
    %v1410 = vunpack.c.h.b16 %v1200
    %v1411 = vunpack.c.l.b16 %v1201
    %v1412 = vunpack.c.h.b16 %v1201
    %v1413 = vunpack.c.l.b16 %v1202
    %v1414 = vunpack.c.h.b16 %v1202
    %v1415 = vunpack.c.l.b16 %v1203
    %v1416 = vunpack.c.h.b16 %v1203
    %v1417 = vunpack.c.l.b16 %v1204
    %v1418 = vunpack.c.h.b16 %v1204
    %v1419 = vunpack.c.l.b16 %v1205
    %v1420 = vunpack.c.h.b16 %v1205
    %v1421 = vunpack.c.l.b16 %v1206
    %v1422 = vunpack.c.h.b16 %v1206
    %v1423 = vunpack.c.l.b16 %v1207
    %v1424 = vunpack.c.h.b16 %v1207
    %v1425 = vunpack.c.l.b16 %v1208
    %v1426 = vunpack.c.h.b16 %v1208
    %v1427 = vunpack.c.l.b16 %v1209
    %v1428 = vunpack.c.h.b16 %v1209
    %v1429 = vunpack.c.l.b16 %v1210
    %v1430 = vunpack.c.h.b16 %v1210
    %v1431 = vunpack.c.l.b16 %v1211
    %v1432 = vunpack.c.h.b16 %v1211
    %v1433 = vunpack.c.l.b16 %v1212
    %v1434 = vunpack.c.h.b16 %v1212
    %v1435 = vunpack.c.l.b16 %v1213
    %v1436 = vunpack.c.h.b16 %v1213
    %v1437 = vunpack.c.l.b16 %v1214
    %v1438 = vunpack.c.h.b16 %v1214
    %v1439 = vunpack.c.l.b16 %v1215
    %v1440 = vunpack.c.h.b16 %v1215
    %v1441 = vunpack.c.l.b16 %v1216
    %v1442 = vunpack.c.h.b16 %v1216
    %v1443 = vunpack.c.l.b16 %v1217
    %v1444 = vunpack.c.h.b16 %v1217
    %v1445 = vunpack.c.l.b16 %v1218
    %v1446 = vunpack.c.h.b16 %v1218
    %v1447 = vunpack.c.l.b16 %v1219
    %v1448 = vunpack.c.h.b16 %v1219
    %v1449 = vunpack.c.l.b16 %v1220
    %v1450 = vunpack.c.h.b16 %v1220
    %v1451 = vunpack.c.l.b16 %v1221
    %v1452 = vunpack.c.h.b16 %v1221
    %v1453 = vunpack.c.l.b16 %v1222
    %v1454 = vunpack.c.h.b16 %v1222
    %v1455 = vunpack.c.l.b16 %v1223
    %v1456 = vunpack.c.h.b16 %v1223
    %v1457 = vunpack.c.l.b16 %v1224
    %v1458 = vunpack.c.h.b16 %v1224
    %v1459 = vunpack.c.l.b16 %v1225
    %v1460 = vunpack.c.h.b16 %v1225
    %v1461 = vunpack.c.l.b16 %v1226
    %v1462 = vunpack.c.h.b16 %v1226
    %v1463 = vunpack.c.l.b16 %v1227
    %v1464 = vunpack.c.h.b16 %v1227
    %v1465 = vunpack.c.l.b16 %v1228
    %v1466 = vunpack.c.h.b16 %v1228
    %v1467 = vunpack.c.l.b16 %v1229
    %v1468 = vunpack.c.h.b16 %v1229
    %v1469 = vunpack.c.l.b16 %v1230
    %v1470 = vunpack.c.h.b16 %v1230
    %v1471 = vunpack.c.l.b16 %v1231
    %v1472 = vunpack.c.h.b16 %v1231
    %v1473 = vunpack.c.l.b16 %v1232
    %v1474 = vunpack.c.h.b16 %v1232
    %v1475 = vunpack.c.l.b16 %v1233
    %v1476 = vunpack.c.h.b16 %v1233
    %v1477 = vunpack.c.l.b16 %v1234
    %v1478 = vunpack.c.h.b16 %v1234
    %v1479 = vunpack.c.l.b16 %v1235
    %v1480 = vunpack.c.h.b16 %v1235
    %v1481 = vunpack.c.l.b16 %v1236
    %v1482 = vunpack.c.h.b16 %v1236
    %v1483 = vunpack.c.l.b16 %v1237
    %v1484 = vunpack.c.h.b16 %v1237
    %v1485 = vunpack.c.l.b16 %v1238
    %v1486 = vunpack.c.h.b16 %v1238
    %v1487 = vunpack.c.l.b16 %v1239
    %v1488 = vunpack.c.h.b16 %v1239
    %v1489 = vunpack.c.l.b16 %v1240
    %v1490 = vunpack.c.h.b16 %v1240
    %v1491 = vunpack.c.l.b16 %v1241
    %v1492 = vunpack.c.h.b16 %v1241
    %v1493 = vunpack.c.l.b16 %v1242
    %v1494 = vunpack.c.h.b16 %v1242
    %v1495 = vunpack.c.l.b16 %v1243
    %v1496 = vunpack.c.h.b16 %v1243
    %v1497 = vunpack.c.l.b16 %v1244
    %v1498 = vunpack.c.h.b16 %v1244
    %v1499 = vunpack.c.l.b16 %v1245
    %v1500 = vunpack.c.h.b16 %v1245
    %v1501 = vunpack.c.l.b16 %v1246
    %v1502 = vunpack.c.h.b16 %v1246
    %v1503 = vunpack.c.l.b16 %v1247
    %v1504 = vunpack.c.h.b16 %v1247
    %v1505 = vunpack.c.l.b16 %v1248
    %v1506 = vunpack.c.h.b16 %v1248
    %v1507 = vunpack.c.l.b16 %v1249
    %v1508 = vunpack.c.h.b16 %v1249
    %v1509 = vunpack.c.l.b16 %v1250
    %v1510 = vunpack.c.h.b16 %v1250
    %v1511 = vunpack.c.l.b16 %v1251
    %v1512 = vunpack.c.h.b16 %v1251
    %v1513 = vunpack.c.l.b16 %v1252
    %v1514 = vunpack.c.h.b16 %v1252
    %v1515 = vunpack.c.l.b16 %v1253
    %v1516 = vunpack.c.h.b16 %v1253
    %v1517 = vunpack.c.l.b16 %v1254
    %v1518 = vunpack.c.h.b16 %v1254
    %v1519 = vunpack.c.l.b16 %v1255
    %v1520 = vunpack.c.h.b16 %v1255
    %v1521 = vunpack.c.l.b16 %v1256
    %v1522 = vunpack.c.h.b16 %v1256
    %v1523 = vunpack.c.l.b16 %v1257
    %v1524 = vunpack.c.h.b16 %v1257
    %v1525 = vunpack.c.l.b16 %v1258
    %v1526 = vunpack.c.h.b16 %v1258
    %v1527 = vunpack.c.l.b16 %v1259
    %v1528 = vunpack.c.h.b16 %v1259
    %v1529 = vunpack.c.l.b16 %v1260
    %v1530 = vunpack.c.h.b16 %v1260
    %v1531 = vunpack.c.l.b16 %v1261
    %v1532 = vunpack.c.h.b16 %v1261
    %v1533 = vunpack.c.l.b16 %v1262
    %v1534 = vunpack.c.h.b16 %v1262
    %v1535 = vunpack.c.l.b16 %v1263
    %v1536 = vunpack.c.h.b16 %v1263
    %v1537 = vunpack.c.l.b16 %v1264
    %v1538 = vunpack.c.h.b16 %v1264
    %v1539 = vunpack.c.l.b16 %v1265
    %v1540 = vunpack.c.h.b16 %v1265
    %v1541 = vunpack.c.l.b16 %v1266
    %v1542 = vunpack.c.h.b16 %v1266
    %v1543 = vunpack.c.l.b16 %v1267
    %v1544 = vunpack.c.h.b16 %v1267
    %v1545 = vunpack.c.l.b16 %v1268
    %v1546 = vunpack.c.h.b16 %v1268
    %v1547 = vunpack.c.l.b16 %v1269
    %v1548 = vunpack.c.h.b16 %v1269
    %v1549 = vunpack.c.l.b16 %v1270
    %v1550 = vunpack.c.h.b16 %v1270
    %v1551 = vunpack.c.l.b16 %v1271
    %v1552 = vunpack.c.h.b16 %v1271
    %v1553 = vunpack.c.l.b16 %v1272
    %v1554 = vunpack.c.h.b16 %v1272
    %v1555 = vunpack.c.l.b16 %v1273
    %v1556 = vunpack.c.h.b16 %v1273
    %v1557 = vunpack.c.l.b16 %v1274
    %v1558 = vunpack.c.h.b16 %v1274
    %v1559 = vunpack.c.l.b16 %v1275
    %v1560 = vunpack.c.h.b16 %v1275
    %v1561 = vunpack.c.l.b16 %v1276
    %v1562 = vunpack.c.h.b16 %v1276
    %v1563 = vunpack.c.l.b16 %v1277
    %v1564 = vunpack.c.h.b16 %v1277
    %v1565 = vunpack.c.l.b16 %v1278
    %v1566 = vunpack.c.h.b16 %v1278
    %v1567 = vpack.c.b16 %v1377, %v1375
    %v1568 = vpack.c.b16 %v1378, %v1376
    %v1569 = vpack.c.b16 %v1381, %v1379
    %v1570 = vpack.c.b16 %v1382, %v1380
    %v1571 = vpack.c.b16 %v1385, %v1383
    %v1572 = vpack.c.b16 %v1386, %v1384
    %v1573 = vpack.c.b16 %v1389, %v1387
    %v1574 = vpack.c.b16 %v1390, %v1388
    %v1575 = vpack.c.b16 %v1393, %v1391
    %v1576 = vpack.c.b16 %v1394, %v1392
    %v1577 = vpack.c.b16 %v1397, %v1395
    %v1578 = vpack.c.b16 %v1398, %v1396
    %v1579 = vpack.c.b16 %v1401, %v1399
    %v1580 = vpack.c.b16 %v1402, %v1400
    %v1581 = vpack.c.b16 %v1405, %v1403
    %v1582 = vpack.c.b16 %v1406, %v1404
    %v1583 = vpack.c.b16 %v1409, %v1407
    %v1584 = vpack.c.b16 %v1410, %v1408
    %v1585 = vpack.c.b16 %v1413, %v1411
    %v1586 = vpack.c.b16 %v1414, %v1412
    %v1587 = vpack.c.b16 %v1417, %v1415
    %v1588 = vpack.c.b16 %v1418, %v1416
    %v1589 = vpack.c.b16 %v1421, %v1419
    %v1590 = vpack.c.b16 %v1422, %v1420
    %v1591 = vpack.c.b16 %v1425, %v1423
    %v1592 = vpack.c.b16 %v1426, %v1424
    %v1593 = vpack.c.b16 %v1429, %v1427
    %v1594 = vpack.c.b16 %v1430, %v1428
    %v1595 = vpack.c.b16 %v1433, %v1431
    %v1596 = vpack.c.b16 %v1434, %v1432
    %v1597 = vpack.c.b16 %v1437, %v1435
    %v1598 = vpack.c.b16 %v1438, %v1436
    %v1599 = vpack.c.b16 %v1441, %v1439
    %v1600 = vpack.c.b16 %v1442, %v1440
    %v1601 = vpack.c.b16 %v1445, %v1443
    %v1602 = vpack.c.b16 %v1446, %v1444
    %v1603 = vpack.c.b16 %v1449, %v1447
    %v1604 = vpack.c.b16 %v1450, %v1448
    %v1605 = vpack.c.b16 %v1453, %v1451
    %v1606 = vpack.c.b16 %v1454, %v1452
    %v1607 = vpack.c.b16 %v1457, %v1455
    %v1608 = vpack.c.b16 %v1458, %v1456
    %v1609 = vpack.c.b16 %v1461, %v1459
    %v1610 = vpack.c.b16 %v1462, %v1460
    %v1611 = vpack.c.b16 %v1465, %v1463
    %v1612 = vpack.c.b16 %v1466, %v1464
    %v1613 = vpack.c.b16 %v1469, %v1467
    %v1614 = vpack.c.b16 %v1470, %v1468
    %v1615 = vpack.c.b16 %v1473, %v1471
    %v1616 = vpack.c.b16 %v1474, %v1472
    %v1617 = vpack.c.b16 %v1477, %v1475
    %v1618 = vpack.c.b16 %v1478, %v1476
    %v1619 = vpack.c.b16 %v1481, %v1479
    %v1620 = vpack.c.b16 %v1482, %v1480
    %v1621 = vpack.c.b16 %v1485, %v1483
    %v1622 = vpack.c.b16 %v1486, %v1484
    %v1623 = vpack.c.b16 %v1489, %v1487
    %v1624 = vpack.c.b16 %v1490, %v1488
    %v1625 = vpack.c.b16 %v1493, %v1491
    %v1626 = vpack.c.b16 %v1494, %v1492
    %v1627 = vpack.c.b16 %v1497, %v1495
    %v1628 = vpack.c.b16 %v1498, %v1496
    %v1629 = vpack.c.b16 %v1501, %v1499
    %v1630 = vpack.c.b16 %v1502, %v1500
    %v1631 = vpack.c.b16 %v1505, %v1503
    %v1632 = vpack.c.b16 %v1506, %v1504
    %v1633 = vpack.c.b16 %v1509, %v1507
    %v1634 = vpack.c.b16 %v1510, %v1508
    %v1635 = vpack.c.b16 %v1513, %v1511
    %v1636 = vpack.c.b16 %v1514, %v1512
    %v1637 = vpack.c.b16 %v1517, %v1515
    %v1638 = vpack.c.b16 %v1518, %v1516
    %v1639 = vpack.c.b16 %v1521, %v1519
    %v1640 = vpack.c.b16 %v1522, %v1520
    %v1641 = vpack.c.b16 %v1525, %v1523
    %v1642 = vpack.c.b16 %v1526, %v1524
    %v1643 = vpack.c.b16 %v1529, %v1527
    %v1644 = vpack.c.b16 %v1530, %v1528
    %v1645 = vpack.c.b16 %v1533, %v1531
    %v1646 = vpack.c.b16 %v1534, %v1532
    %v1647 = vpack.c.b16 %v1537, %v1535
    %v1648 = vpack.c.b16 %v1538, %v1536
    %v1649 = vpack.c.b16 %v1541, %v1539
    %v1650 = vpack.c.b16 %v1542, %v1540
    %v1651 = vpack.c.b16 %v1545, %v1543
    %v1652 = vpack.c.b16 %v1546, %v1544
    %v1653 = vpack.c.b16 %v1549, %v1547
    %v1654 = vpack.c.b16 %v1550, %v1548
    %v1655 = vpack.c.b16 %v1553, %v1551
    %v1656 = vpack.c.b16 %v1554, %v1552
    %v1657 = vpack.c.b16 %v1557, %v1555
    %v1658 = vpack.c.b16 %v1558, %v1556
    %v1659 = vpack.c.b16 %v1561, %v1559
    %v1660 = vpack.c.b16 %v1562, %v1560
    %v1661 = vpack.c.b16 %v1565, %v1563
    %v1662 = vpack.c.b16 %v1566, %v1564
    %1759 = vmatprep.subr.bf16.mxu0 %v1568
    %1760 = vmatpush1.bf16.msra.mxu0 %v1567
    %1761 = vmatprep.subr.bf16.mxu0 %v1570
    %1762 = vmatpush1.bf16.msra.mxu0 %v1569
    %1763 = vmatprep.subr.bf16.mxu0 %v1572
    %1764 = vmatpush1.bf16.msra.mxu0 %v1571
    %1765 = vmatprep.subr.bf16.mxu0 %v1574
    %1766 = vmatpush1.bf16.msra.mxu0 %v1573
    %1767 = vmatprep.subr.bf16.mxu0 %v1576
    %1768 = vmatpush1.bf16.msra.mxu0 %v1575
    %1769 = vmatprep.subr.bf16.mxu0 %v1578
    %1770 = vmatpush1.bf16.msra.mxu0 %v1577
    %1771 = vmatprep.subr.bf16.mxu0 %v1580
    %1772 = vmatpush1.bf16.msra.mxu0 %v1579
    %1773 = vmatprep.subr.bf16.mxu0 %v1582
    %1774 = vmatpush1.bf16.msra.mxu0 %v1581
    %1775 = vmatprep.subr.bf16.mxu0 %v1584
    %1776 = vmatpush1.bf16.msra.mxu0 %v1583
    %1777 = vmatprep.subr.bf16.mxu0 %v1586
    %1778 = vmatpush1.bf16.msra.mxu0 %v1585
    %1779 = vmatprep.subr.bf16.mxu0 %v1588
    %1780 = vmatpush1.bf16.msra.mxu0 %v1587
    %1781 = vmatprep.subr.bf16.mxu0 %v1590
    %1782 = vmatpush1.bf16.msra.mxu0 %v1589
    %1783 = vmatprep.subr.bf16.mxu0 %v1592
    %1784 = vmatpush1.bf16.msra.mxu0 %v1591
    %1785 = vmatprep.subr.bf16.mxu0 %v1594
    %1786 = vmatpush1.bf16.msra.mxu0 %v1593
    %1787 = vmatprep.subr.bf16.mxu0 %v1596
    %1788 = vmatpush1.bf16.msra.mxu0 %v1595
    %1789 = vmatprep.subr.bf16.mxu0 %v1598
    %1790 = vmatpush1.bf16.msra.mxu0 %v1597
    %1791 = vmatprep.mubr.bf16.mxu0 %v1172
    %1792 = vmatmul.mubr.bf16.gmra.mrb[0].mxu0 %v1171
    %v1793 = vpop.f32.mrb[0].mxu0
    %v1794 = vadd.f32 0.0, %v1793
    %v1795 = vpop.f32.mrb[0].mxu0
    %v1796 = vadd.f32 0.0, %v1795
    %v1797 = vpop.f32.mrb[0].mxu0
    %v1798 = vadd.f32 0.0, %v1797
    %v1799 = vpop.f32.mrb[0].mxu0
    %v1800 = vadd.f32 0.0, %v1799
    %1801 = vmatprep.mubr.bf16.mxu0 %v1178
    %1802 = vmatmul.mubr.bf16.gmra.mrb[0].mxu0 %v1177
    %v1803 = vpop.f32.mrb[0].mxu0
    %v1804 = vadd.f32 0.0, %v1803
    %v1805 = vpop.f32.mrb[0].mxu0
    %v1806 = vadd.f32 0.0, %v1805
    %v1807 = vpop.f32.mrb[0].mxu0
    %v1808 = vadd.f32 0.0, %v1807
    %v1809 = vpop.f32.mrb[0].mxu0
    %v1810 = vadd.f32 0.0, %v1809
    %1811 = vdwg.mxu0
    %1812 = vmatprep.subr.bf16.mxu0 %v1600
    %1813 = vmatpush1.bf16.msra.mxu0 %v1599
    %1814 = vmatprep.subr.bf16.mxu0 %v1602
    %1815 = vmatpush1.bf16.msra.mxu0 %v1601
    %1816 = vmatprep.subr.bf16.mxu0 %v1604
    %1817 = vmatpush1.bf16.msra.mxu0 %v1603
    %1818 = vmatprep.subr.bf16.mxu0 %v1606
    %1819 = vmatpush1.bf16.msra.mxu0 %v1605
    %1820 = vmatprep.subr.bf16.mxu0 %v1608
    %1821 = vmatpush1.bf16.msra.mxu0 %v1607
    %1822 = vmatprep.subr.bf16.mxu0 %v1610
    %1823 = vmatpush1.bf16.msra.mxu0 %v1609
    %1824 = vmatprep.subr.bf16.mxu0 %v1612
    %1825 = vmatpush1.bf16.msra.mxu0 %v1611
    %1826 = vmatprep.subr.bf16.mxu0 %v1614
    %1827 = vmatpush1.bf16.msra.mxu0 %v1613
    %1828 = vmatprep.subr.bf16.mxu0 %v1616
    %1829 = vmatpush1.bf16.msra.mxu0 %v1615
    %1830 = vmatprep.subr.bf16.mxu0 %v1618
    %1831 = vmatpush1.bf16.msra.mxu0 %v1617
    %1832 = vmatprep.subr.bf16.mxu0 %v1620
    %1833 = vmatpush1.bf16.msra.mxu0 %v1619
    %1834 = vmatprep.subr.bf16.mxu0 %v1622
    %1835 = vmatpush1.bf16.msra.mxu0 %v1621
    %1836 = vmatprep.subr.bf16.mxu0 %v1624
    %1837 = vmatpush1.bf16.msra.mxu0 %v1623
    %1838 = vmatprep.subr.bf16.mxu0 %v1626
    %1839 = vmatpush1.bf16.msra.mxu0 %v1625
    %1840 = vmatprep.subr.bf16.mxu0 %v1628
    %1841 = vmatpush1.bf16.msra.mxu0 %v1627
    %1842 = vmatprep.subr.bf16.mxu0 %v1630
    %1843 = vmatpush1.bf16.msra.mxu0 %v1629
    %1844 = vmatprep.mubr.bf16.mxu0 %v1174
    %1845 = vmatmul.mubr.bf16.gmra.mrb[0].mxu0 %v1173
    %v1846 = vpop.f32.mrb[0].mxu0
    %v1847 = vadd.f32 %v1794, %v1846
    %v1848 = vpop.f32.mrb[0].mxu0
    %v1849 = vadd.f32 %v1796, %v1848
    %v1850 = vpop.f32.mrb[0].mxu0
    %v1851 = vadd.f32 %v1798, %v1850
    %v1852 = vpop.f32.mrb[0].mxu0
    %v1853 = vadd.f32 %v1800, %v1852
    %1854 = vmatprep.mubr.bf16.mxu0 %v1180
    %1855 = vmatmul.mubr.bf16.gmra.mrb[0].mxu0 %v1179
    %v1856 = vpop.f32.mrb[0].mxu0
    %v1857 = vadd.f32 %v1804, %v1856
    %v1858 = vpop.f32.mrb[0].mxu0
    %v1859 = vadd.f32 %v1806, %v1858
    %v1860 = vpop.f32.mrb[0].mxu0
    %v1861 = vadd.f32 %v1808, %v1860
    %v1862 = vpop.f32.mrb[0].mxu0
    %v1863 = vadd.f32 %v1810, %v1862
    %1864 = vdwg.mxu0
    %1865 = vmatprep.subr.bf16.mxu0 %v1632
    %1866 = vmatpush1.bf16.msra.mxu0 %v1631
    %1867 = vmatprep.subr.bf16.mxu0 %v1634
    %1868 = vmatpush1.bf16.msra.mxu0 %v1633
    %1869 = vmatprep.subr.bf16.mxu0 %v1636
    %1870 = vmatpush1.bf16.msra.mxu0 %v1635
    %1871 = vmatprep.subr.bf16.mxu0 %v1638
    %1872 = vmatpush1.bf16.msra.mxu0 %v1637
    %1873 = vmatprep.subr.bf16.mxu0 %v1640
    %1874 = vmatpush1.bf16.msra.mxu0 %v1639
    %1875 = vmatprep.subr.bf16.mxu0 %v1642
    %1876 = vmatpush1.bf16.msra.mxu0 %v1641
    %1877 = vmatprep.subr.bf16.mxu0 %v1644
    %1878 = vmatpush1.bf16.msra.mxu0 %v1643
    %1879 = vmatprep.subr.bf16.mxu0 %v1646
    %1880 = vmatpush1.bf16.msra.mxu0 %v1645
    %1881 = vmatprep.subr.bf16.mxu0 %v1648
    %1882 = vmatpush1.bf16.msra.mxu0 %v1647
    %1883 = vmatprep.subr.bf16.mxu0 %v1650
    %1884 = vmatpush1.bf16.msra.mxu0 %v1649
    %1885 = vmatprep.subr.bf16.mxu0 %v1652
    %1886 = vmatpush1.bf16.msra.mxu0 %v1651
    %1887 = vmatprep.subr.bf16.mxu0 %v1654
    %1888 = vmatpush1.bf16.msra.mxu0 %v1653
    %1889 = vmatprep.subr.bf16.mxu0 %v1656
    %1890 = vmatpush1.bf16.msra.mxu0 %v1655
    %1891 = vmatprep.subr.bf16.mxu0 %v1658
    %1892 = vmatpush1.bf16.msra.mxu0 %v1657
    %1893 = vmatprep.subr.bf16.mxu0 %v1660
    %1894 = vmatpush1.bf16.msra.mxu0 %v1659
    %1895 = vmatprep.subr.bf16.mxu0 %v1662
    %1896 = vmatpush1.bf16.msra.mxu0 %v1661
    %1897 = vmatprep.mubr.bf16.mxu0 %v1176
    %1898 = vmatmul.mubr.bf16.gmra.mrb[0].mxu0 %v1175
    %v1899 = vpop.f32.mrb[0].mxu0
    %v1900 = vadd.f32 %v1847, %v1899
    %v1901 = vpop.f32.mrb[0].mxu0
    %v1902 = vadd.f32 %v1849, %v1901
    %v1903 = vpop.f32.mrb[0].mxu0
    %v1904 = vadd.f32 %v1851, %v1903
    %v1905 = vpop.f32.mrb[0].mxu0
    %v1906 = vadd.f32 %v1853, %v1905
    %1907 = vmatprep.mubr.bf16.mxu0 %v1182
    %1908 = vmatmul.mubr.bf16.gmra.mrb[0].mxu0 %v1181
    %v1909 = vpop.f32.mrb[0].mxu0
    %v1910 = vadd.f32 %v1857, %v1909
    %v1911 = vpop.f32.mrb[0].mxu0
    %v1912 = vadd.f32 %v1859, %v1911
    %v1913 = vpop.f32.mrb[0].mxu0
    %v1914 = vadd.f32 %v1861, %v1913
    %v1915 = vpop.f32.mrb[0].mxu0
    %v1916 = vadd.f32 %v1863, %v1915
    %1917 = vdwg.mxu0
    %v1918 = vadd.f32 %v1900, %v1904
    %v1919 = vadd.f32 %v1918, %v1910
    %v1920 = vadd.f32 %v1919, %v1914
    %v1921 = vrot.slane %v1920, 4
    %v1922 = vadd.f32 %v1920, %v1921
    %v1923 = vrot.slane %v1922, 2
    %v1924 = vadd.f32 %v1922, %v1923
    %v1925 = vrot.slane %v1924, 1
    %v1926 = vadd.f32 %v1924, %v1925
    %v1927 = vadd.f32 %v1902, %v1906
    %v1928 = vadd.f32 %v1927, %v1912
    %v1929 = vadd.f32 %v1928, %v1916
    %v1930 = vrot.slane %v1929, 4
    %v1931 = vadd.f32 %v1929, %v1930
    %v1932 = vrot.slane %v1931, 2
    %v1933 = vadd.f32 %v1931, %v1932
    %v1934 = vrot.slane %v1933, 1
    %v1935 = vadd.f32 %v1933, %v1934
    %v1936 = vmul.f32 %v1900, %v1900
    %v1937 = vmul.f32 %v1902, %v1902
    %v1938 = vmul.f32 %v1904, %v1904
    %v1939 = vmul.f32 %v1906, %v1906
    %v1940 = vmul.f32 %v1910, %v1910
    %v1941 = vmul.f32 %v1912, %v1912
    %v1942 = vmul.f32 %v1914, %v1914
    %v1943 = vmul.f32 %v1916, %v1916
    %v1944 = vadd.f32 %v1936, %v1938
    %v1945 = vadd.f32 %v1944, %v1940
    %v1946 = vadd.f32 %v1945, %v1942
    %v1947 = vrot.slane %v1946, 4
    %v1948 = vadd.f32 %v1946, %v1947
    %v1949 = vrot.slane %v1948, 2
    %v1950 = vadd.f32 %v1948, %v1949
    %v1951 = vrot.slane %v1950, 1
    %v1952 = vadd.f32 %v1950, %v1951
    %v1953 = vadd.f32 %v1937, %v1939
    %v1954 = vadd.f32 %v1953, %v1941
    %v1955 = vadd.f32 %v1954, %v1943
    %v1956 = vrot.slane %v1955, 4
    %v1957 = vadd.f32 %v1955, %v1956
    %v1958 = vrot.slane %v1957, 2
    %v1959 = vadd.f32 %v1957, %v1958
    %v1960 = vrot.slane %v1959, 1
    %v1961 = vadd.f32 %v1959, %v1960
    %v1962 = vsel %vm994, %v1926, %v1952
    %v1963 = vsel %vm994, %v1935, %v1961
    %1964 = vrot.lane.b32.xlu0 %v1962, 16
    %v1965 = vpop.permute.xlu0 %1964
    %1966 = vrot.lane.b32.xlu0 %v1963, 16
    %v1967 = vpop.permute.xlu0 %1966
    %v1968 = vsel %vm1003, %v1965, %v1967
    %v1969 = vsel %vm1003, %v1967, %v1965
    %v1970 = vadd.f32 %v1962, %v1969
    %v1971 = vadd.f32 %v1963, %v1968
    %1972 = vrot.lane.b32.xlu0 %v1970, 32
    %v1973 = vpop.permute.xlu0 %1972
    %1974 = vrot.lane.b32.xlu0 %v1971, 32
    %v1975 = vpop.permute.xlu0 %1974
    %v1976 = vsel %vm1012, %v1973, %v1975
    %v1977 = vsel %vm1012, %v1975, %v1973
    %v1978 = vadd.f32 %v1970, %v1977
    %v1979 = vadd.f32 %v1971, %v1976
    %1980 = vrot.lane.b32.xlu0 %v1978, 64
    %v1981 = vpop.permute.xlu0 %1980
    %1982 = vrot.lane.b32.xlu0 %v1979, 64
    %v1983 = vpop.permute.xlu0 %1982
    %v1984 = vsel %vm1021, %v1981, %v1983
    %v1985 = vsel %vm1021, %v1983, %v1981
    %v1986 = vadd.f32 %v1978, %v1985
    %v1987 = vadd.f32 %v1979, %v1984
    %v1988 = vadd.f32 %v1986, %v1987
    %v1989 = vmul.f32 %v1988, 0.001953125
    %v1990 = vmul.f32 %v1989, %v1989
    %v1992 = vrot.slane %v1990, 7
    %v1994 = vsub.f32 %v1989, %v1992
    %v1995 = vld [vmem:[%s5] sm:$0x3]
    %v1996 = vadd.f32 %v1994, 1e-05
    %v1997 = vrsqrt.pop %v1996
    %v1999 = vcombine.low %v1997, %v1997
    %v2001 = vunpack.c.l.s4 1966171168
    %v2002 = vunpack.c.0.s8 %v2001
    %v2003 = vlaneseq
    %v2004 = vshrl.u32 %v2003, 7
    %v2005 = vsub.s32 %v2002, %v2004
    %v2006 = vrot.slane %v1999, %v2005
    %v2007 = vcombine.high %v2006, %v2006
    %v2009 = vunpack.c.l.s4 1966171168
    %v2010 = vunpack.c.0.s8 %v2009
    %v2011 = vlaneseq
    %v2012 = vshrl.u32 %v2011, 7
    %v2013 = vsub.s32 %v2010, %v2012
    %v2014 = vrot.slane %v2007, %v2013
    %v2016 = vmul.f32 %v1995, %v2014
    %v2017 = vld [vmem:[%s6] sm:$0x3]
    %v2019 = vlaneseq
    %v2020 = vshrl.u32 %v2019, 7
    %v2021 = vsub.s32 0, %v2020
    %v2022 = vrot.slane %v2016, %v2021
    %v2023 = vlaneseq
    %v2024 = vshrl.u32 %v2023, 7
    %v2025 = vsub.s32 1, %v2024
    %v2026 = vrot.slane %v2016, %v2025
    %v2029 = vmul.f32 %v1989, %v2022
    %v2030 = vmul.f32 %v1989, %v2026
    %v2033 = vcombine.low %v2029, %v2030
    %v2035 = vunpack.c.l.s4 1966171168
    %v2036 = vunpack.c.0.s8 %v2035
    %v2037 = vlaneseq
    %v2038 = vshrl.u32 %v2037, 7
    %v2039 = vsub.s32 %v2036, %v2038
    %v2040 = vrot.slane %v2033, %v2039
    %v2042 = vunpack.c.l.s4 1966171168
    %v2043 = vunpack.c.0.s8 %v2042
    %v2044 = vlaneseq
    %v2045 = vshrl.u32 %v2044, 7
    %v2046 = vsub.s32 %v2043, %v2045
    %v2047 = vrot.slane %v2040, %v2046
    %v2049 = vsub.f32 %v2017, %v2047
    %v2050 = vmul.f32 %v1900, %v2022
    %v2051 = vmul.f32 %v1902, %v2026
    %v2052 = vmul.f32 %v1904, %v2022
    %v2053 = vmul.f32 %v1906, %v2026
    %v2054 = vmul.f32 %v1910, %v2022
    %v2055 = vmul.f32 %v1912, %v2026
    %v2056 = vmul.f32 %v1914, %v2022
    %v2057 = vmul.f32 %v1916, %v2026
    %v2059 = vlaneseq
    %v2060 = vshrl.u32 %v2059, 7
    %v2061 = vsub.s32 0, %v2060
    %v2062 = vrot.slane %v2049, %v2061
    %v2063 = vlaneseq
    %v2064 = vshrl.u32 %v2063, 7
    %v2065 = vsub.s32 1, %v2064
    %v2066 = vrot.slane %v2049, %v2065
    %v2069 = vadd.f32 %v2050, %v2062
    %v2070 = vadd.f32 %v2051, %v2066
    %v2071 = vadd.f32 %v2052, %v2062
    %v2072 = vadd.f32 %v2053, %v2066
    %v2073 = vadd.f32 %v2054, %v2062
    %v2074 = vadd.f32 %v2055, %v2066
    %v2075 = vadd.f32 %v2056, %v2062
    %v2076 = vadd.f32 %v2057, %v2066
    %v2077 = vadd.f32 %v145, %v2069
    %v2078 = vadd.f32 %v146, %v2070
    %v2079 = vadd.f32 %v147, %v2071
    %v2080 = vadd.f32 %v148, %v2072
    %v2081 = vadd.f32 %v149, %v2073
    %v2082 = vadd.f32 %v150, %v2074
    %v2083 = vadd.f32 %v151, %v2075
    %v2084 = vadd.f32 %v152, %v2076
    %v2085 = vmax.f32 %v2077, 0.0
    %v2086 = vmax.f32 %v2078, 0.0
    %v2087 = vmax.f32 %v2079, 0.0
    %v2088 = vmax.f32 %v2080, 0.0
    %v2089 = vmax.f32 %v2081, 0.0
    %v2090 = vmax.f32 %v2082, 0.0
    %v2091 = vmax.f32 %v2083, 0.0
    %v2092 = vmax.f32 %v2084, 0.0
    %2093 = vst [vmem:[#allocation8] sm:$0xff] %v2085
    %2094 = vst [vmem:[#allocation8 + $0x8] sm:$0xff] %v2086
    %2095 = vst [vmem:[#allocation8 + $0x10] sm:$0xff] %v2087
    %2096 = vst [vmem:[#allocation8 + $0x18] sm:$0xff] %v2088
    %2097 = vst [vmem:[#allocation8 + $0x20] sm:$0xff] %v2089
    %2098 = vst [vmem:[#allocation8 + $0x28] sm:$0xff] %v2090
    %2099 = vst [vmem:[#allocation8 + $0x30] sm:$0xff] %v2091
    %2100 = vst [vmem:[#allocation8 + $0x38] sm:$0xff] %v2092
    // Predicated region
    $region42: #{tpu_custom_call.1} parent=1 // pred_check
      _
    $region43: #{tpu_custom_call.1} parent=1 // pred_check_branch
      %2102 = sbr.rel (0) target = $region45
    $region44: #{tpu_custom_call.1} parent=1 // pred_region
      %s2104 = ssub.s32 1024, 1024
      %2105 = vsyncadd [#allocation4], %s2104
      %s2106 = sshll.u32 [#allocation8], 4
      %s2107 = int_to_ptr.vmem [resolvable:$true] %s2106
      %2112 = dma.vmem_to_hbm [thread:$0]  %s2107, 1024, %s7, [#allocation4], 256, 256, 16
    $region45: #{tpu_custom_call.1} parent=1 // pred_fallthru
      _
    // Predicated region
    $region46: #{tpu_custom_call.1} parent=1 // pred_check
      _
    $region47: #{tpu_custom_call.1} parent=1 // pred_check_branch
      %2114 = sbr.rel (0) target = $region49
    $region48: #{tpu_custom_call.1} parent=1 // pred_region
      %2115 = dma.done [#allocation4], 1024
    $region49: #{tpu_custom_call.1} parent=1 // pred_fallthru
      _
    %2116 = vsyncpa [#allocation3], 1
    %2117 = vsyncpa [#allocation6], 1
    %2118 = vsyncpa [#allocation4], 1

</llo_original>
